<compile_context>
chip_gen: v6e
topology: v6e:2x2x1
jax: 0.10.0
libtpu: 0.0.40
codegen_flags: <defaults>
</compile_context>

<pallas_src>
import functools

import numpy as np
import jax
import jax.numpy as jnp
from jax.experimental import pallas as pl
from jax.experimental.pallas import tpu as pltpu


# ----------------------------- parameter setup -----------------------------
def _hz_to_mel(f):
    return 2595.0 * np.log10(1.0 + f / 700.0)


def _mel_to_hz(m):
    return 700.0 * (10.0 ** (m / 2595.0) - 1.0)


def melscale_fbanks(n_freqs, f_min, f_max, n_mels, sample_rate):
    """torchaudio.functional.melscale_fbanks (htk scale, norm=None)."""
    all_freqs = np.linspace(0.0, sample_rate // 2, n_freqs)
    m_min, m_max = _hz_to_mel(f_min), _hz_to_mel(f_max)
    m_pts = np.linspace(m_min, m_max, n_mels + 2)
    f_pts = _mel_to_hz(m_pts)
    f_diff = f_pts[1:] - f_pts[:-1]                        # (n_mels+1,)
    slopes = f_pts[None, :] - all_freqs[:, None]           # (n_freqs, n_mels+2)
    down_slopes = -slopes[:, :-2] / f_diff[:-1]            # (n_freqs, n_mels)
    up_slopes = slopes[:, 2:] / f_diff[1:]                 # (n_freqs, n_mels)
    fb = np.maximum(0.0, np.minimum(down_slopes, up_slopes))
    return fb.astype(np.float32)                           # (n_freqs, n_mels)


def dft_bases(n_fft):
    """Real/imag DFT bases (rectangular window, onesided): re = x@cos, im = x@(-sin)."""
    n_freq = n_fft // 2 + 1
    n = np.arange(n_fft)[:, None]
    f = np.arange(n_freq)[None, :]
    ang = 2.0 * np.pi * n * f / n_fft
    cos_b = np.cos(ang).astype(np.float32)                 # (n_fft, n_freq)
    sin_b = (-np.sin(ang)).astype(np.float32)              # (n_fft, n_freq)
    return cos_b, sin_b


def _round_up(x, m):
    return (x + m - 1) // m * m


def _cdiv(a, b):
    return -(-a // b)


def _pick_tm(rows, outer_parallel, tm_max=256):
    """Row tile.  Always a multiple of 8; a multiple of 128 whenever the rows are
    split over more than one tile so the lane-major (.., TM) output store stays
    lane-aligned.  tm_max must be a multiple of 128.
    TODO(synk): bump tm_max to 512 on v7x (after the bf16/single-buffer slimming
    there is VMEM headroom; worth a few % per-step-overhead amortization)."""
    r8 = _round_up(rows, 8)
    if outer_parallel >= 2:                  # outer grid axis already gives >=2 steps
        return r8 if r8 <= tm_max else tm_max
    if r8 <= 128:
        return r8                            # too small to split along rows
    return min(tm_max, _round_up(_cdiv(rows, 2), 128))


# ------------------------------- Pallas kernels ------------------------------
def _finish_mel(res, fb, fbn, sin_mask, Fp, power):
    """Packed DFT result (TM, 2*Fp) -> transposed mel tile (Mp, TM).

    res columns: [0:Fp)   cos bins 0 .. n_fft//2 - 1 (zero padded to Fp)
                 [Fp]     Nyquist-bin real part (stored in the all-zero sin-bin-0 lane)
                 [Fp+1:)  -sin bins 1 .. n_fft//2 - 1 (zero padded)
    """
    re = res[:, :Fp]
    imq = res[:, Fp:]
    im = imq * sin_mask                       # (1, Fp) constant mask zeroes the Nyquist lane
    re_nyq = imq[:, 0:1]                      # (TM, 1)

    ps = re * re + im * im
    if power == 1:
        spec = jnp.sqrt(ps)
        spec_nyq = jnp.abs(re_nyq)
    else:
        spec = ps
        spec_nyq = re_nyq * re_nyq

    # Small (TM,Fp)x(Fp,Mp) dot (<5% of the MXU work): keep f32 operands so the
    # positive-weight mel sum stays at full precision.
    mel = jnp.dot(spec, fb, preferred_element_type=jnp.float32)
    mel = mel + spec_nyq * fbn                # add Nyquist bin contribution
    return jnp.transpose(mel)                 # (Mp, TM): transposed, lane-dense store


def _melspec_fused_kernel(main_ref, tail_ref, *refs, TM, r, hop, Fp, power, split):
    """In-kernel framing: accumulate r partial dots, one per hop-chunk offset,
    directly from the (TM, hop) chunk slab + (8, hop) tail (no frames slab)."""
    if split:
        bhi_ref, blo_ref, fb_ref, fbn_ref, mask_ref, o_ref = refs
    else:
        bhi_ref, fb_ref, fbn_ref, mask_ref, o_ref = refs
        blo_ref = None

    main = main_ref[0]                        # (TM, hop) f32
    tail = tail_ref[0]                        # (8, hop)  f32

    res = None
    for k in range(r):
        # LHS rows for chunk-offset k: chunks k .. k+TM-1 of [main; tail].
        lhs = main if k == 0 else jnp.concatenate([main[k:], tail[:k]], axis=0)
        lhs_hi = lhs.astype(jnp.bfloat16)
        bh = bhi_ref[pl.ds(k * hop, hop), :]
        acc = jnp.dot(lhs_hi, bh, preferred_element_type=jnp.float32)
        if split:
            # hi/lo split keeps ~f32 accuracy with 3 native bf16 MXU passes.
            lhs_lo = (lhs - lhs_hi.astype(jnp.float32)).astype(jnp.bfloat16)
            bl = blo_ref[pl.ds(k * hop, hop), :]
            acc = acc + jnp.dot(lhs_hi, bl, preferred_element_type=jnp.float32)
            acc = acc + jnp.dot(lhs_lo, bh, preferred_element_type=jnp.float32)
        res = acc if res is None else res + acc

    o_ref[0] = _finish_mel(res, fb_ref[...], fbn_ref[...], mask_ref[...], Fp, power)


def _melspec_frames_kernel(frames_ref, *refs, Fp, power, split):
    if split:
        bhi_ref, blo_ref, fb_ref, fbn_ref, mask_ref, o_ref = refs
    else:
        bhi_ref, fb_ref, fbn_ref, mask_ref, o_ref = refs
        blo_ref = None

    f = frames_ref[...]
    f_hi = f.astype(jnp.bfloat16)
    res = jnp.dot(f_hi, bhi_ref[...], preferred_element_type=jnp.float32)
    if split:
        f_lo = (f - f_hi.astype(jnp.float32)).astype(jnp.bfloat16)
        res = res + jnp.dot(f_hi, blo_ref[...], preferred_element_type=jnp.float32)
        res = res + jnp.dot(f_lo, bhi_ref[...], preferred_element_type=jnp.float32)
    o_ref[...] = _finish_mel(res, fb_ref[...], fbn_ref[...], mask_ref[...], Fp, power)


# --------------------------------- module ------------------------------------
class MelSpecPallas:
    def __init__(self, n_fft=2048, hop_length=1024, n_mels=128, sample_rate=16000,
                 power=1, f_min=40, f_max=7600, pad_end=True, center=False,
                 compute="bf16x3"):
        assert center is False, "center=True is not supported"
        assert power in (1, 2)
        assert n_fft % 2 == 0
        assert compute in ("bf16x3", "bf16")
        self.n_fft = n_fft
        self.hop_length = hop_length
        self.n_mels = n_mels
        self.power = power
        self.pad_end = pad_end
        self.split = compute == "bf16x3"      # hi/lo split-bf16 (default, ~f32 accuracy)

        n_half = n_fft // 2
        n_freq = n_half + 1
        Fp = _round_up(n_half, 128)           # MXU frequency lanes (Nyquist handled on VPU)
        Mp = _round_up(n_mels, 128)           # lane-dense mel output
        self.Fp, self.Mp = Fp, Mp

        # Packed cos/sin basis -> single MXU operand (Nyquist real stashed in the
        # otherwise all-zero sin-bin-0 lane).
        cos_b, sin_b = dft_bases(n_fft)
        basis = np.zeros((n_fft, 2 * Fp), np.float32)
        basis[:, :n_half] = cos_b[:, :n_half]
        basis[:, Fp] = cos_b[:, n_half]
        basis[:, Fp + 1:Fp + n_half] = sin_b[:, 1:n_half]

        b32 = jnp.asarray(basis)
        b_hi = b32.astype(jnp.bfloat16)
        consts = [b_hi]
        if self.split:
            b_lo = (b32 - b_hi.astype(jnp.float32)).astype(jnp.bfloat16)
            consts.append(b_lo)

        fb = melscale_fbanks(n_freq, f_min, f_max, n_mels, sample_rate)
        fb_main = np.zeros((Fp, Mp), np.float32)
        fb_main[:n_half, :n_mels] = fb[:n_half]
        fb_nyq = np.zeros((1, Mp), np.float32)
        fb_nyq[0, :n_mels] = fb[n_half]
        sin_mask = np.ones((1, Fp), np.float32)
        sin_mask[0, 0] = 0.0                  # bin-0 imaginary part is identically zero

        consts += [jnp.asarray(fb_main), jnp.asarray(fb_nyq), jnp.asarray(sin_mask)]
        self.consts = tuple(consts)
        # Whole-array, single-buffered, VMEM-resident constants (no double-buffering).
        self._const_specs = [pl.BlockSpec(memory_space=pltpu.MemorySpace.VMEM)
                             for _ in self.consts]

    # ----------------------------------------------------------------- helpers
    def _vmem_limit(self, TM, in_lanes):
        const_b = sum(int(np.prod(c.shape)) * c.dtype.itemsize for c in self.consts)
        block_b = 2 * 4 * (TM * in_lanes + 8 * in_lanes + self.Mp * TM)   # double-buffered blocks
        temp_b = 8 * TM * 2 * self.Fp * 4 + (4 << 20)                     # in-kernel temporaries
        need = const_b + block_b + temp_b
        # Cap at 56 MiB: safe on v7x (64 MiB/TC) and well under v5e/v6e's 128 MiB.
        return int(min(56 << 20, max(32 << 20, need)))

    # ------------------------------------------------------------------ call
    def __call__(self, audio):
        B, L = audio.shape
        n_fft, hop = self.n_fft, self.hop_length
        assert L >= n_fft, "audio shorter than n_fft (matches torch.stft, center=False)"
        if self.pad_end:
            remainder = (L - n_fft) % hop
            pad = 0 if remainder == 0 else hop - remainder
            if pad:
                audio = jnp.pad(audio, ((0, 0), (0, pad)))
            L = L + pad
        T = 1 + (L - n_fft) // hop

        if n_fft % hop == 0 and n_fft // hop <= 9 and hop % 16 == 0:
            return self._forward_fused(audio, B, T)
        # TODO(synk): gcd-chunk in-kernel framing for hop % n_fft != 0; this path
        # still uses a wrapper-side gather.
        return self._forward_frames(audio, B, T)

    # ----------------------------------------------- fused in-kernel framing
    def _forward_fused(self, audio, B, T):
        n_fft, hop = self.n_fft, self.hop_length
        r = n_fft // hop
        Fp, Mp = self.Fp, self.Mp

        TM = _pick_tm(T, B)
        n_tiles = _cdiv(T, TM)
        C = n_tiles * TM + 8                      # number of hop-sized chunks
        target_len = C * hop
        L_cur = audio.shape[1]
        if L_cur < target_len:
            audio = jnp.pad(audio, ((0, 0), (0, target_len - L_cur)))
        elif L_cur > target_len:
            audio = audio[:, :target_len]
        chunked = audio.reshape(B, C, hop)        # zero-copy reshape

        kernel = functools.partial(_melspec_fused_kernel, TM=TM, r=r, hop=hop, Fp=Fp,
                                   power=self.power, split=self.split)
        out = pl.pallas_call(
            kernel,
            out_shape=jax.ShapeDtypeStruct((B, Mp, n_tiles * TM), jnp.float32),
            grid_spec=pltpu.PrefetchScalarGridSpec(
                num_scalar_prefetch=0,
                grid=(B, n_tiles),
                in_specs=[
                    # TM chunks of this tile
                    pl.BlockSpec((1, TM, hop), lambda b, j: (b, j, 0)),
                    # 8 overlap chunks belonging to the next tile
                    pl.BlockSpec((1, 8, hop),
                                 lambda b, j: (b, (j + 1) * (TM // 8), 0)),
                    # constants: whole-array, single-buffered, VMEM resident
                    *self._const_specs,
                ],
                out_specs=pl.BlockSpec((1, Mp, TM), lambda b, j: (b, 0, j)),
            ),
            compiler_params=pltpu.CompilerParams(
                dimension_semantics=("parallel", "parallel"),
                vmem_limit_bytes=self._vmem_limit(TM, hop)),
        )(chunked, chunked, *self.consts)

        return out[:, :self.n_mels, :T]           # (B, n_mels, T), no wrapper transpose

    # --------------------------------------------- fallback: wrapper framing
    def _forward_frames(self, audio, B, T):
        n_fft, hop = self.n_fft, self.hop_length
        Fp, Mp = self.Fp, self.Mp

        idx = hop * np.arange(T)[:, None] + np.arange(n_fft)[None, :]
        frames = audio[:, idx].reshape(B * T, n_fft)
        M = B * T
        TM = _pick_tm(M, 1)
        M_pad = _round_up(M, TM)
        if M_pad > M:
            frames = jnp.pad(frames, ((0, M_pad - M), (0, 0)))

        kernel = functools.partial(_melspec_frames_kernel, Fp=Fp, power=self.power,
                                   split=self.split)
        out = pl.pallas_call(
            kernel,
            out_shape=jax.ShapeDtypeStruct((Mp, M_pad), jnp.float32),
            grid_spec=pltpu.PrefetchScalarGridSpec(
                num_scalar_prefetch=0,
                grid=(M_pad // TM,),
                in_specs=[
                    pl.BlockSpec((TM, n_fft), lambda i: (i, 0)),
                    *self._const_specs,
                ],
                out_specs=pl.BlockSpec((Mp, TM), lambda i: (0, i)),
            ),
            compiler_params=pltpu.CompilerParams(
                dimension_semantics=("parallel",),
                vmem_limit_bytes=self._vmem_limit(TM, n_fft)),
        )(frames, *self.consts)

        mel = out[:self.n_mels, :M].reshape(self.n_mels, B, T)
        return jnp.transpose(mel, (1, 0, 2))


# ------------------------------ reference (JAX) ------------------------------
def melspec_ref(audio, n_fft, hop, n_mels, sample_rate, power, f_min, f_max,
                pad_end=True):
    B, L = audio.shape
    if pad_end:
        remainder = (L - n_fft) % hop
        pad = 0 if remainder == 0 else hop - remainder
        audio = jnp.pad(audio, ((0, 0), (0, pad)))
        L = L + pad
    T = 1 + (L - n_fft) // hop
    idx = hop * np.arange(T)[:, None] + np.arange(n_fft)[None, :]
    frames = audio[:, idx]                                             # (B, T, n_fft)
    cos_b, sin_b = dft_bases(n_fft)
    hi = jax.lax.Precision.HIGHEST
    re = jnp.einsum("btn,nf->btf", frames, jnp.asarray(cos_b), precision=hi)
    im = jnp.einsum("btn,nf->btf", frames, jnp.asarray(sin_b), precision=hi)
    ps = re * re + im * im
    spec = jnp.sqrt(ps) if power == 1 else ps
    fb = jnp.asarray(melscale_fbanks(n_fft // 2 + 1, f_min, f_max, n_mels, sample_rate))
    mel = jnp.einsum("btf,fm->btm", spec, fb, precision=hi)
    return jnp.transpose(mel, (0, 2, 1))


if __name__ == "__main__":
    k1, k2 = jax.random.split(jax.random.PRNGKey(0))
    cfg = dict(n_fft=256, hop_length=128, n_mels=16, sample_rate=16000,
               power=1, f_min=40, f_max=7600, pad_end=True, center=False)
    mod = MelSpecPallas(**cfg)                 # default: split-bf16 (~f32 accuracy)

    # Case 1: tiny input (pad_end active), single small row tile per batch row.
    a1 = jax.random.normal(k1, (2, 1040), dtype=jnp.float32)
    o1 = jax.block_until_ready(mod(a1))
    r1 = jax.block_until_ready(melspec_ref(a1, 256, 128, 16, 16000, 1, 40, 7600))
    assert o1.shape == r1.shape == (2, 16, 8), o1.shape
    np.testing.assert_allclose(np.asarray(o1), np.asarray(r1), rtol=5e-4, atol=2e-3)

    # Case 2: multi-tile (TM=256, two row tiles per batch element, grid 2x2).
    a2 = jax.random.normal(k2, (2, 33400), dtype=jnp.float32)
    o2 = jax.block_until_ready(mod(a2))
    r2 = jax.block_until_ready(melspec_ref(a2, 256, 128, 16, 16000, 1, 40, 7600))
    assert o2.shape == r2.shape == (2, 16, 260), o2.shape
    np.testing.assert_allclose(np.asarray(o2), np.asarray(r2), rtol=5e-4, atol=2e-3)

    # Case 3: fastest single-pass bf16 MXU mode (looser tolerance by construction).
    mod_fast = MelSpecPallas(**cfg, compute="bf16")
    o3 = jax.block_until_ready(mod_fast(a2))
    np.testing.assert_allclose(np.asarray(o3), np.asarray(r2), rtol=5e-2, atol=5e-1)

    print("KERNEL_OK")
</pallas_src>

<mosaic_0001>
module attributes {stable_mosaic.version = 11 : i64} {
  func.func @_melspec_fused_kernel(%arg0: i32, %arg1: i32, %arg2: memref<1x8x128xf32, #tpu.memory_space<vmem>>, %arg3: memref<1x8x128xf32, #tpu.memory_space<vmem>>, %arg4: memref<256x256xbf16, #tpu.memory_space<vmem>>, %arg5: memref<256x256xbf16, #tpu.memory_space<vmem>>, %arg6: memref<128x128xf32, #tpu.memory_space<vmem>>, %arg7: memref<1x128xf32, #tpu.memory_space<vmem>>, %arg8: memref<1x128xf32, #tpu.memory_space<vmem>>, %arg9: memref<1x128x8xf32, #tpu.memory_space<vmem>>) attributes {dimension_semantics = [#tpu.dimension_semantics<parallel>, #tpu.dimension_semantics<parallel>], iteration_bounds = array<i64: 2, 1>, scalar_prefetch = 0 : i64, scratch_operands = 0 : i64, tpu.core_type = #tpu.core_type<tc>, window_params = [{transform_indices = @transform_0, window_bounds = array<i64: 1, 8, 128>}, {transform_indices = @transform_1, window_bounds = array<i64: 1, 8, 128>}, {pipeline_mode = #tpu.pipeline_mode<synchronous>, transform_indices = @transform_2, window_bounds = array<i64: 256, 256>}, {pipeline_mode = #tpu.pipeline_mode<synchronous>, transform_indices = @transform_3, window_bounds = array<i64: 256, 256>}, {pipeline_mode = #tpu.pipeline_mode<synchronous>, transform_indices = @transform_4, window_bounds = array<i64: 128, 128>}, {pipeline_mode = #tpu.pipeline_mode<synchronous>, transform_indices = @transform_5, window_bounds = array<i64: 1, 128>}, {pipeline_mode = #tpu.pipeline_mode<synchronous>, transform_indices = @transform_6, window_bounds = array<i64: 1, 128>}, {transform_indices = @transform_7, window_bounds = array<i64: 1, 128, 8>}]} {
    %c0 = arith.constant 0 : index
    %c0_0 = arith.constant 0 : index
    %c0_1 = arith.constant 0 : index
    %0 = vector.load %arg2[%c0, %c0_0, %c0_1] : memref<1x8x128xf32, #tpu.memory_space<vmem>>, vector<1x8x128xf32>
    %1 = vector.shape_cast %0 : vector<1x8x128xf32> to vector<8x128xf32>
    %c0_2 = arith.constant 0 : index
    %c0_3 = arith.constant 0 : index
    %c0_4 = arith.constant 0 : index
    %2 = vector.load %arg3[%c0_2, %c0_3, %c0_4] : memref<1x8x128xf32, #tpu.memory_space<vmem>>, vector<1x8x128xf32>
    %3 = vector.shape_cast %2 : vector<1x8x128xf32> to vector<8x128xf32>
    %4 = arith.truncf %1 : vector<8x128xf32> to vector<8x128xbf16>
    %c0_5 = arith.constant 0 : index
    %c0_6 = arith.constant 0 : index
    %5 = vector.load %arg4[%c0_5, %c0_6] : memref<256x256xbf16, #tpu.memory_space<vmem>>, vector<128x256xbf16>
    %cst = arith.constant dense<0.000000e+00> : vector<8x256xf32>
    %6 = tpu.matmul %4, %5, %cst {dimension_numbers = #tpu.dot_dimension_numbers<[1], [0], [0], [1], [0, 0, 1, 1], [], []>} : vector<8x128xbf16>, vector<128x256xbf16>, vector<8x256xf32> -> vector<8x256xf32>
    %7 = arith.extf %4 : vector<8x128xbf16> to vector<8x128xf32>
    %8 = arith.subf %1, %7 : vector<8x128xf32>
    %9 = arith.truncf %8 : vector<8x128xf32> to vector<8x128xbf16>
    %c0_7 = arith.constant 0 : index
    %c0_8 = arith.constant 0 : index
    %10 = vector.load %arg5[%c0_7, %c0_8] : memref<256x256xbf16, #tpu.memory_space<vmem>>, vector<128x256xbf16>
    %cst_9 = arith.constant dense<0.000000e+00> : vector<8x256xf32>
    %11 = tpu.matmul %4, %10, %cst_9 {dimension_numbers = #tpu.dot_dimension_numbers<[1], [0], [0], [1], [0, 0, 1, 1], [], []>} : vector<8x128xbf16>, vector<128x256xbf16>, vector<8x256xf32> -> vector<8x256xf32>
    %12 = arith.addf %6, %11 : vector<8x256xf32>
    %cst_10 = arith.constant dense<0.000000e+00> : vector<8x256xf32>
    %13 = tpu.matmul %9, %5, %cst_10 {dimension_numbers = #tpu.dot_dimension_numbers<[1], [0], [0], [1], [0, 0, 1, 1], [], []>} : vector<8x128xbf16>, vector<128x256xbf16>, vector<8x256xf32> -> vector<8x256xf32>
    %14 = arith.addf %12, %13 : vector<8x256xf32>
    %15 = vector.extract_strided_slice %1 {offsets = [1, 0], sizes = [7, 128], strides = [1, 1]} : vector<8x128xf32> to vector<7x128xf32>
    %16 = vector.extract_strided_slice %3 {offsets = [0, 0], sizes = [1, 128], strides = [1, 1]} : vector<8x128xf32> to vector<1x128xf32>
    %17 = tpu.concatenate %15, %16 in 0 : vector<7x128xf32>, vector<1x128xf32> -> vector<8x128xf32>
    %18 = arith.truncf %17 : vector<8x128xf32> to vector<8x128xbf16>
    %c128 = arith.constant 128 : index
    %c0_11 = arith.constant 0 : index
    %19 = vector.load %arg4[%c128, %c0_11] : memref<256x256xbf16, #tpu.memory_space<vmem>>, vector<128x256xbf16>
    %cst_12 = arith.constant dense<0.000000e+00> : vector<8x256xf32>
    %20 = tpu.matmul %18, %19, %cst_12 {dimension_numbers = #tpu.dot_dimension_numbers<[1], [0], [0], [1], [0, 0, 1, 1], [], []>} : vector<8x128xbf16>, vector<128x256xbf16>, vector<8x256xf32> -> vector<8x256xf32>
    %21 = arith.extf %18 : vector<8x128xbf16> to vector<8x128xf32>
    %22 = arith.subf %17, %21 : vector<8x128xf32>
    %23 = arith.truncf %22 : vector<8x128xf32> to vector<8x128xbf16>
    %c128_13 = arith.constant 128 : index
    %c0_14 = arith.constant 0 : index
    %24 = vector.load %arg5[%c128_13, %c0_14] : memref<256x256xbf16, #tpu.memory_space<vmem>>, vector<128x256xbf16>
    %cst_15 = arith.constant dense<0.000000e+00> : vector<8x256xf32>
    %25 = tpu.matmul %18, %24, %cst_15 {dimension_numbers = #tpu.dot_dimension_numbers<[1], [0], [0], [1], [0, 0, 1, 1], [], []>} : vector<8x128xbf16>, vector<128x256xbf16>, vector<8x256xf32> -> vector<8x256xf32>
    %26 = arith.addf %20, %25 : vector<8x256xf32>
    %cst_16 = arith.constant dense<0.000000e+00> : vector<8x256xf32>
    %27 = tpu.matmul %23, %19, %cst_16 {dimension_numbers = #tpu.dot_dimension_numbers<[1], [0], [0], [1], [0, 0, 1, 1], [], []>} : vector<8x128xbf16>, vector<128x256xbf16>, vector<8x256xf32> -> vector<8x256xf32>
    %28 = arith.addf %26, %27 : vector<8x256xf32>
    %29 = arith.addf %14, %28 : vector<8x256xf32>
    %c0_17 = arith.constant 0 : index
    %c0_18 = arith.constant 0 : index
    %30 = vector.load %arg6[%c0_17, %c0_18] : memref<128x128xf32, #tpu.memory_space<vmem>>, vector<128x128xf32>
    %c0_19 = arith.constant 0 : index
    %c0_20 = arith.constant 0 : index
    %31 = vector.load %arg7[%c0_19, %c0_20] : memref<1x128xf32, #tpu.memory_space<vmem>>, vector<1x128xf32>
    %c0_21 = arith.constant 0 : index
    %c0_22 = arith.constant 0 : index
    %32 = vector.load %arg8[%c0_21, %c0_22] : memref<1x128xf32, #tpu.memory_space<vmem>>, vector<1x128xf32>
    %33 = vector.extract_strided_slice %29 {offsets = [0, 0], sizes = [8, 128], strides = [1, 1]} : vector<8x256xf32> to vector<8x128xf32>
    %34 = vector.extract_strided_slice %29 {offsets = [0, 128], sizes = [8, 128], strides = [1, 1]} : vector<8x256xf32> to vector<8x128xf32>
    %35 = vector.broadcast %32 : vector<1x128xf32> to vector<8x128xf32>
    %36 = arith.mulf %34, %35 : vector<8x128xf32>
    %37 = vector.extract_strided_slice %34 {offsets = [0, 0], sizes = [8, 1], strides = [1, 1]} : vector<8x128xf32> to vector<8x1xf32>
    %38 = arith.mulf %33, %33 : vector<8x128xf32>
    %39 = arith.mulf %36, %36 : vector<8x128xf32>
    %40 = arith.addf %38, %39 : vector<8x128xf32>
    %41 = math.sqrt %40 : vector<8x128xf32>
    %42 = math.absf %37 : vector<8x1xf32>
    %cst_23 = arith.constant dense<0.000000e+00> : vector<8x128xf32>
    %43 = tpu.matmul %41, %30, %cst_23 {dimension_numbers = #tpu.dot_dimension_numbers<[1], [0], [0], [1], [0, 0, 1, 1], [], []>} : vector<8x128xf32>, vector<128x128xf32>, vector<8x128xf32> -> vector<8x128xf32>
    %44 = vector.broadcast %42 : vector<8x1xf32> to vector<8x128xf32>
    %45 = vector.broadcast %31 : vector<1x128xf32> to vector<8x128xf32>
    %46 = arith.mulf %44, %45 : vector<8x128xf32>
    %47 = arith.addf %43, %46 : vector<8x128xf32>
    %48 = tpu.transpose %47, [1, 0] : vector<8x128xf32> -> vector<128x8xf32>
    %c0_24 = arith.constant 0 : index
    %c0_25 = arith.constant 0 : index
    %c0_26 = arith.constant 0 : index
    %49 = vector.load %arg9[%c0_24, %c0_25, %c0_26] : memref<1x128x8xf32, #tpu.memory_space<vmem>>, vector<1x128x8xf32>
    %50 = vector.shape_cast %49 : vector<1x128x8xf32> to vector<128x8xf32>
    %51 = vector.shape_cast %48 : vector<128x8xf32> to vector<1x128x8xf32>
    tpu.vector_store %arg9[%c0_24, %c0_25, %c0_26], %51 {strides = array<i32>} : memref<1x128x8xf32, #tpu.memory_space<vmem>>, vector<1x128x8xf32>,
    return
  }
  func.func @transform_0(%arg0: i32, %arg1: i32) -> (i32, i32, i32) {
    %c0_i32 = arith.constant 0 : i32
    %c0_i32_0 = arith.constant 0 : i32
    return %arg0, %arg1, %c0_i32 : i32, i32, i32
  }
  func.func @transform_1(%arg0: i32, %arg1: i32) -> (i32, i32, i32) {
    %c1_i32 = arith.constant 1 : i32
    %0 = arith.addi %arg1, %c1_i32 : i32
    %c1_i32_0 = arith.constant 1 : i32
    %1 = arith.muli %0, %c1_i32_0 : i32
    %c0_i32 = arith.constant 0 : i32
    %c0_i32_1 = arith.constant 0 : i32
    return %arg0, %1, %c0_i32 : i32, i32, i32
  }
  func.func @transform_2(%arg0: i32, %arg1: i32) -> (i32, i32) {
    %c0_i32 = arith.constant 0 : i32
    %c0_i32_0 = arith.constant 0 : i32
    %c0_i32_1 = arith.constant 0 : i32
    return %c0_i32, %c0_i32_0 : i32, i32
  }
  func.func @transform_3(%arg0: i32, %arg1: i32) -> (i32, i32) {
    %c0_i32 = arith.constant 0 : i32
    %c0_i32_0 = arith.constant 0 : i32
    %c0_i32_1 = arith.constant 0 : i32
    return %c0_i32, %c0_i32_0 : i32, i32
  }
  func.func @transform_4(%arg0: i32, %arg1: i32) -> (i32, i32) {
    %c0_i32 = arith.constant 0 : i32
    %c0_i32_0 = arith.constant 0 : i32
    %c0_i32_1 = arith.constant 0 : i32
    return %c0_i32, %c0_i32_0 : i32, i32
  }
  func.func @transform_5(%arg0: i32, %arg1: i32) -> (i32, i32) {
    %c0_i32 = arith.constant 0 : i32
    %c0_i32_0 = arith.constant 0 : i32
    %c0_i32_1 = arith.constant 0 : i32
    return %c0_i32, %c0_i32_0 : i32, i32
  }
  func.func @transform_6(%arg0: i32, %arg1: i32) -> (i32, i32) {
    %c0_i32 = arith.constant 0 : i32
    %c0_i32_0 = arith.constant 0 : i32
    %c0_i32_1 = arith.constant 0 : i32
    return %c0_i32, %c0_i32_0 : i32, i32
  }
  func.func @transform_7(%arg0: i32, %arg1: i32) -> (i32, i32, i32) {
    %c0_i32 = arith.constant 0 : i32
    %c0_i32_0 = arith.constant 0 : i32
    return %arg0, %c0_i32, %arg1 : i32, i32, i32
  }
}

</mosaic_0001>

<llo_original>
// kernel: tpu_custom_call.1
$region0: #{tpu_custom_call.1}
  #allocation0 [shape = 'u32[]', space=smem, size = 0x4, offset = 0x4, fixed_abs, tag = 'smem constant byte address 0x4 - core index']
  #allocation1 [shape = 'u32[144,128]{1,0:T(1,128)}', space=vmem, size = 0x12000, scoped, tag = 'internal scratch']
  %s0 = inlined_call_operand.hbm [shape: f32[2,16,128], index: 0, kind: input, shape index: {}]
  %s1 = inlined_call_operand.hbm [shape: f32[2,16,128], index: 1, kind: input, shape index: {}]
  %s2 = inlined_call_operand.hbm [shape: bf16[256,256], index: 2, kind: input, shape index: {}]
  %s3 = inlined_call_operand.hbm [shape: bf16[256,256], index: 3, kind: input, shape index: {}]
  %s4 = inlined_call_operand.hbm [shape: f32[128,128], index: 4, kind: input, shape index: {}]
  %s5 = inlined_call_operand.vmem [shape: f32[1,128], index: 5, kind: input, shape index: {}]
  %s6 = inlined_call_operand.vmem [shape: f32[1,128], index: 6, kind: input, shape index: {}]
  %s7 = inlined_call_operand.vmem [shape: f32[2,128,8], index: 7, kind: output, shape index: {}]
  %s8 = sld [smem:[#allocation0]]
  $region81: #{tpu_custom_call.1} parent=0
    _
  %s10 = ssub.s32 1, %s8
  %s11 = scalar_select 0, %s10, %s8
  $region1: #{tpu_custom_call.1} parent=0
    #allocation2 [shape = 'u8[8192]{0}', space=vmem, size = 0x2000, scoped, tag = 'input window, operand 0']
    #allocation3 [shape = 's32[2]{0}', space=sflag, size = 0x8, scoped, tag = 'scoped memory for tpu_custom_call.1']
    #allocation4 [shape = 'u8[8192]{0}', space=vmem, size = 0x2000, scoped, tag = 'input window, operand 1']
    #allocation5 [shape = 's32[2]{0}', space=sflag, size = 0x8, scoped, tag = 'scoped memory for tpu_custom_call.1']
    #allocation6 [shape = 'u8[131072]{0}', space=vmem, size = 0x20000, scoped, tag = 'input window, operand 2, single buffered']
    #allocation7 [shape = 'u8[131072]{0}', space=vmem, size = 0x20000, scoped, tag = 'input window, operand 3, single buffered']
    #allocation8 [shape = 's32[1]{0}', space=sflag, size = 0x4, scoped, tag = 'scoped memory for tpu_custom_call.1']
    #allocation9 [shape = 'u8[65536]{0}', space=vmem, size = 0x10000, scoped, tag = 'input window, operand 4, single buffered']
    %12 = vsyncpa [#allocation3], 0
    %s13 = scalar_lea.sflag [#allocation3], 1
    %14 = vsyncpa %s13, 0
    %15 = vsyncpa [#allocation5], 0
    %s16 = scalar_lea.sflag [#allocation5], 1
    %17 = vsyncpa %s16, 0
    %18 = vsyncpa [#allocation8], 0
    loop: start=0, step=1, limit=4
    $region2: #{tpu_custom_call.1} parent=1 // loop_pre_header
      _
    $region3: #{tpu_custom_call.1} parent=1 // loop_header
      %s20 = sphi 0, %s24
      %p21 = scmp.ge.s32.totalorder %s20, 4
      %s27 = sphi 0, %s39
      %s28 = sphi 0, %s35
      %s29 = sphi 0, %s27
      %s30 = sphi 0, %s28
      %s31 = sphi 0, %s29
      %s32 = sphi 0, %s30
      %s44 = sphi 0, %s46
      %s47 = sphi 0, %s44
      %s48 = sphi 0, %s47
      %s64 = sphi 0, %s48
      %s74 = sphi 0, %s76
      %s77 = sphi 0, %s74
      %s78 = sphi 0, %s77
      %s94 = sphi 0, %s78
      %s98 = sphi 0, %s98
      %s100 = sphi 0, %s98
      %s101 = sphi 0, %s100
      %s115 = sphi 0, %s101
      %s119 = sphi 0, %s119
      %s121 = sphi 0, %s119
      %s122 = sphi 0, %s121
      %s136 = sphi 0, %s122
      %s140 = sphi 0, %s140
      %s142 = sphi 0, %s140
      %s143 = sphi 0, %s142
      %s157 = sphi 0, %s143
      %s161 = sphi 0, %s161
      %s163 = sphi 0, %s161
      %s164 = sphi 0, %s163
      %s178 = sphi 0, %s164
      %s182 = sphi 0, %s182
      %s184 = sphi 0, %s182
      %s185 = sphi 0, %s184
      %s199 = sphi 0, %s185
      %s207 = sphi 0, %s209
      %s210 = sphi 0, %s207
      %s211 = sphi 0, %s210
      %s227 = sphi 0, %s211
    $region4: #{tpu_custom_call.1} parent=1 // loop_header_branch
      %23 = sbr.rel (%p21) target = $region8
    $region5: #{tpu_custom_call.1} parent=1 // loop_body
      %s25 = ssub.s32 %s20, 1
      %s26 = ssub.s32 %s20, 2
      %s33 = sadd.s32 1, %s28
      %p34 = scmp.ge.s32.totalorder %s33, 1
      %s35 = scalar_select %p34, 0, %s33
      %s36 = sadd.s32 1, %s27
      %s37 = scalar_select %p34, %s36, %s27
      %p38 = scmp.ge.s32.totalorder %s37, 2
      %s39 = scalar_select %p38, 0, %s37
      %s40 = ssub.s32 %s27, %s39
      %s41 = ssub.s32 %s28, %s35
      %s42 = sor.u32 %s40, %s41
      %p43 = scmp.eq.s32.totalorder %s42, 0
      %s45 = sadd.s32 %s44, 1
      %s46 = scalar_select %p43, %s44, %s45
      %p49 = pneg %p43
      %p50 = scmp.eq.s32.totalorder %s20, 1
      %p51 = por %p49, %p50
      %p52 = scmp.ne.s32.totalorder %s44, %s47
      %p53 = scmp.eq.s32.totalorder %s20, 0
      %p54 = por %p52, %p53
      %p55 = scmp.ne.s32.totalorder %s44, %s47
      %p56 = scmp.eq.s32.totalorder %s25, 1
      %p57 = por %p55, %p56
      %p58 = scmp.ne.s32.totalorder %s47, %s48
      %p59 = scmp.eq.s32.totalorder %s25, 0
      %p60 = por %p58, %p59
      %p61 = scmp.ne.s32.totalorder %s47, %s48
      %p62 = scmp.eq.s32.totalorder %s26, 1
      %p63 = por %p61, %p62
      %p65 = scmp.ne.s32.totalorder %s48, %s64
      %p66 = scmp.eq.s32.totalorder %s26, 0
      %p67 = por %p65, %p66
      %s68 = sadd.s32 %s28, 1
      %s69 = sadd.s32 %s35, 1
      %s70 = ssub.s32 %s27, %s39
      %s71 = ssub.s32 %s68, %s69
      %s72 = sor.u32 %s70, %s71
      %p73 = scmp.eq.s32.totalorder %s72, 0
      %s75 = sadd.s32 %s74, 1
      %s76 = scalar_select %p73, %s74, %s75
      %p79 = pneg %p73
      %p80 = scmp.eq.s32.totalorder %s20, 1
      %p81 = por %p79, %p80
      %p82 = scmp.ne.s32.totalorder %s74, %s77
      %p83 = scmp.eq.s32.totalorder %s20, 0
      %p84 = por %p82, %p83
      %p85 = scmp.ne.s32.totalorder %s74, %s77
      %p86 = scmp.eq.s32.totalorder %s25, 1
      %p87 = por %p85, %p86
      %p88 = scmp.ne.s32.totalorder %s77, %s78
      %p89 = scmp.eq.s32.totalorder %s25, 0
      %p90 = por %p88, %p89
      %p91 = scmp.ne.s32.totalorder %s77, %s78
      %p92 = scmp.eq.s32.totalorder %s26, 1
      %p93 = por %p91, %p92
      %p95 = scmp.ne.s32.totalorder %s78, %s94
      %p96 = scmp.eq.s32.totalorder %s26, 0
      %p97 = por %p95, %p96
      %s99 = sadd.s32 %s98, 1
      %p102 = scmp.eq.s32.totalorder %s20, 1
      %p103 = scmp.ne.s32.totalorder %s98, %s100
      %p104 = scmp.eq.s32.totalorder %s20, 0
      %p105 = por %p103, %p104
      %p106 = scmp.ne.s32.totalorder %s98, %s100
      %p107 = scmp.eq.s32.totalorder %s25, 1
      %p108 = por %p106, %p107
      %p109 = scmp.ne.s32.totalorder %s100, %s101
      %p110 = scmp.eq.s32.totalorder %s25, 0
      %p111 = por %p109, %p110
      %p112 = scmp.ne.s32.totalorder %s100, %s101
      %p113 = scmp.eq.s32.totalorder %s26, 1
      %p114 = por %p112, %p113
      %p116 = scmp.ne.s32.totalorder %s101, %s115
      %p117 = scmp.eq.s32.totalorder %s26, 0
      %p118 = por %p116, %p117
      %s120 = sadd.s32 %s119, 1
      %p123 = scmp.eq.s32.totalorder %s20, 1
      %p124 = scmp.ne.s32.totalorder %s119, %s121
      %p125 = scmp.eq.s32.totalorder %s20, 0
      %p126 = por %p124, %p125
      %p127 = scmp.ne.s32.totalorder %s119, %s121
      %p128 = scmp.eq.s32.totalorder %s25, 1
      %p129 = por %p127, %p128
      %p130 = scmp.ne.s32.totalorder %s121, %s122
      %p131 = scmp.eq.s32.totalorder %s25, 0
      %p132 = por %p130, %p131
      %p133 = scmp.ne.s32.totalorder %s121, %s122
      %p134 = scmp.eq.s32.totalorder %s26, 1
      %p135 = por %p133, %p134
      %p137 = scmp.ne.s32.totalorder %s122, %s136
      %p138 = scmp.eq.s32.totalorder %s26, 0
      %p139 = por %p137, %p138
      %s141 = sadd.s32 %s140, 1
      %p144 = scmp.eq.s32.totalorder %s20, 1
      %p145 = scmp.ne.s32.totalorder %s140, %s142
      %p146 = scmp.eq.s32.totalorder %s20, 0
      %p147 = por %p145, %p146
      %p148 = scmp.ne.s32.totalorder %s140, %s142
      %p149 = scmp.eq.s32.totalorder %s25, 1
      %p150 = por %p148, %p149
      %p151 = scmp.ne.s32.totalorder %s142, %s143
      %p152 = scmp.eq.s32.totalorder %s25, 0
      %p153 = por %p151, %p152
      %p154 = scmp.ne.s32.totalorder %s142, %s143
      %p155 = scmp.eq.s32.totalorder %s26, 1
      %p156 = por %p154, %p155
      %p158 = scmp.ne.s32.totalorder %s143, %s157
      %p159 = scmp.eq.s32.totalorder %s26, 0
      %p160 = por %p158, %p159
      %s162 = sadd.s32 %s161, 1
      %p165 = scmp.eq.s32.totalorder %s20, 1
      %p166 = scmp.ne.s32.totalorder %s161, %s163
      %p167 = scmp.eq.s32.totalorder %s20, 0
      %p168 = por %p166, %p167
      %p169 = scmp.ne.s32.totalorder %s161, %s163
      %p170 = scmp.eq.s32.totalorder %s25, 1
      %p171 = por %p169, %p170
      %p172 = scmp.ne.s32.totalorder %s163, %s164
      %p173 = scmp.eq.s32.totalorder %s25, 0
      %p174 = por %p172, %p173
      %p175 = scmp.ne.s32.totalorder %s163, %s164
      %p176 = scmp.eq.s32.totalorder %s26, 1
      %p177 = por %p175, %p176
      %p179 = scmp.ne.s32.totalorder %s164, %s178
      %p180 = scmp.eq.s32.totalorder %s26, 0
      %p181 = por %p179, %p180
      %s183 = sadd.s32 %s182, 1
      %p186 = scmp.eq.s32.totalorder %s20, 1
      %p187 = scmp.ne.s32.totalorder %s182, %s184
      %p188 = scmp.eq.s32.totalorder %s20, 0
      %p189 = por %p187, %p188
      %p190 = scmp.ne.s32.totalorder %s182, %s184
      %p191 = scmp.eq.s32.totalorder %s25, 1
      %p192 = por %p190, %p191
      %p193 = scmp.ne.s32.totalorder %s184, %s185
      %p194 = scmp.eq.s32.totalorder %s25, 0
      %p195 = por %p193, %p194
      %p196 = scmp.ne.s32.totalorder %s184, %s185
      %p197 = scmp.eq.s32.totalorder %s26, 1
      %p198 = por %p196, %p197
      %p200 = scmp.ne.s32.totalorder %s185, %s199
      %p201 = scmp.eq.s32.totalorder %s26, 0
      %p202 = por %p200, %p201
      %s203 = ssub.s32 %s27, %s39
      %s204 = ssub.s32 %s28, %s35
      %s205 = sor.u32 %s203, %s204
      %p206 = scmp.eq.s32.totalorder %s205, 0
      %s208 = sadd.s32 %s207, 1
      %s209 = scalar_select %p206, %s207, %s208
      %p212 = pneg %p206
      %p213 = scmp.eq.s32.totalorder %s20, 1
      %p214 = por %p212, %p213
      %p215 = scmp.ne.s32.totalorder %s207, %s210
      %p216 = scmp.eq.s32.totalorder %s20, 0
      %p217 = por %p215, %p216
      %p218 = scmp.ne.s32.totalorder %s207, %s210
      %p219 = scmp.eq.s32.totalorder %s25, 1
      %p220 = por %p218, %p219
      %p221 = scmp.ne.s32.totalorder %s210, %s211
      %p222 = scmp.eq.s32.totalorder %s25, 0
      %p223 = por %p221, %p222
      %p224 = scmp.ne.s32.totalorder %s210, %s211
      %p225 = scmp.eq.s32.totalorder %s26, 1
      %p226 = por %p224, %p225
      %p228 = scmp.ne.s32.totalorder %s211, %s227
      %p229 = scmp.eq.s32.totalorder %s26, 0
      %p230 = por %p228, %p229
      %p231 = scmp.le.s32.totalorder 1, %s20
      %p232 = scmp.lt.s32.totalorder %s20, 3
      %p233 = pnand %p231, %p232
      %p234 = pneg %p233
      // Predicated region
      $region9: #{tpu_custom_call.1} parent=5 // pred_check
        _
      $region10: #{tpu_custom_call.1} parent=5 // pred_check_branch
        %236 = sbr.rel (%p233) target = $region12
      $region11: #{tpu_custom_call.1} parent=5 // pred_region
        %s237 = ssub.s32 %s20, 1
        // Predicated region
        $region13: #{tpu_custom_call.1} parent=11 // pred_check
          %p238 = pneg %p111
        $region14: #{tpu_custom_call.1} parent=11 // pred_check_branch
          %240 = sbr.rel (%p238) target = $region16
        $region15: #{tpu_custom_call.1} parent=11 // pred_region
          %s242 = ssub.s32 4096, 4096
          %243 = vsyncadd [#allocation5], %s242
          %s244 = sshll.u32 [#allocation6], 4
          %s245 = int_to_ptr.vmem [resolvable:$true] %s244
          %250 = dma.hbm_to_vmem [thread:$0]  %s2, 4096, %s245, [#allocation5], 128, 128, 8
        $region16: #{tpu_custom_call.1} parent=11 // pred_fallthru
          _
        // Predicated region
        $region17: #{tpu_custom_call.1} parent=11 // pred_check
          %p251 = pneg %p132
        $region18: #{tpu_custom_call.1} parent=11 // pred_check_branch
          %253 = sbr.rel (%p251) target = $region20
        $region19: #{tpu_custom_call.1} parent=11 // pred_region
          %s255 = ssub.s32 4096, 4096
          %256 = vsyncadd [#allocation8], %s255
          %s257 = sshll.u32 [#allocation7], 4
          %s258 = int_to_ptr.vmem [resolvable:$true] %s257
          %263 = dma.hbm_to_vmem [thread:$0]  %s3, 4096, %s258, [#allocation8], 128, 128, 8
        $region20: #{tpu_custom_call.1} parent=11 // pred_fallthru
          _
        // Predicated region
        $region21: #{tpu_custom_call.1} parent=11 // pred_check
          %p264 = pneg %p153
        $region22: #{tpu_custom_call.1} parent=11 // pred_check_branch
          %266 = sbr.rel (%p264) target = $region24
        $region23: #{tpu_custom_call.1} parent=11 // pred_region
          %s268 = ssub.s32 2048, 2048
          %269 = vsyncadd [#allocation8], %s268
          %s270 = sshll.u32 [#allocation9], 4
          %s271 = int_to_ptr.vmem [resolvable:$true] %s270
          %276 = dma.hbm_to_vmem [thread:$0]  %s4, 2048, %s271, [#allocation8], 128, 128, 8
        $region24: #{tpu_custom_call.1} parent=11 // pred_fallthru
          _
        // Predicated region
        $region25: #{tpu_custom_call.1} parent=11 // pred_check
          %p277 = pneg %p174
        $region26: #{tpu_custom_call.1} parent=11 // pred_check_branch
          %279 = sbr.rel (%p277) target = $region28
        $region27: #{tpu_custom_call.1} parent=11 // pred_region
          _
        $region28: #{tpu_custom_call.1} parent=11 // pred_fallthru
          _
        // Predicated region
        $region29: #{tpu_custom_call.1} parent=11 // pred_check
          %p280 = pneg %p195
        $region30: #{tpu_custom_call.1} parent=11 // pred_check_branch
          %282 = sbr.rel (%p280) target = $region32
        $region31: #{tpu_custom_call.1} parent=11 // pred_region
          _
        $region32: #{tpu_custom_call.1} parent=11 // pred_fallthru
          _
      $region12: #{tpu_custom_call.1} parent=5 // pred_fallthru
        _
      %p283 = scmp.lt.s32.totalorder %s20, 2
      // Predicated region
      $region33: #{tpu_custom_call.1} parent=5 // pred_check
        %p284 = pneg %p283
      $region34: #{tpu_custom_call.1} parent=5 // pred_check_branch
        %286 = sbr.rel (%p284) target = $region36
      $region35: #{tpu_custom_call.1} parent=5 // pred_region
        // Predicated region
        $region37: #{tpu_custom_call.1} parent=35 // pred_check
          %p287 = pneg %p54
        $region38: #{tpu_custom_call.1} parent=35 // pred_check_branch
          %289 = sbr.rel (%p287) target = $region40
        $region39: #{tpu_custom_call.1} parent=35 // pred_region
          %s290 = sand.u32 %s44, 1
          %s291 = scalar_lea.sflag [#allocation3], %s290
          %s292 = sand.u32 %s44, 1
          %s293 = smul.addr %s292, 8
          %s294 = scalar_lea.vmem [#allocation2], %s293
          %s296 = ssub.s32 128, 128
          %297 = vsyncadd %s291, %s296
          %s298 = smul.addr %s27, 2
          %s299 = sadd.s32 %s28, %s298
          %s300 = smul.addr %s299, 128
          %s301 = scalar_lea.hbm %s0, %s300
          %s303 = sshll.u32 %s294, 4
          %s304 = int_to_ptr.vmem [resolvable:$true] %s303
          %306 = dma.hbm_to_vmem [thread:$0]  %s301, 128, %s304, %s291
        $region40: #{tpu_custom_call.1} parent=35 // pred_fallthru
          _
        // Predicated region
        $region41: #{tpu_custom_call.1} parent=35 // pred_check
          %p307 = pneg %p84
        $region42: #{tpu_custom_call.1} parent=35 // pred_check_branch
          %309 = sbr.rel (%p307) target = $region44
        $region43: #{tpu_custom_call.1} parent=35 // pred_region
          %s310 = sand.u32 %s20, 1
          %s311 = scalar_lea.sflag [#allocation5], %s310
          %s312 = sand.u32 %s74, 1
          %s313 = smul.addr %s312, 8
          %s314 = scalar_lea.vmem [#allocation4], %s313
          %s315 = sadd.s32 %s28, 1
          %s317 = ssub.s32 128, 128
          %318 = vsyncadd %s311, %s317
          %s319 = smul.addr %s27, 2
          %s320 = sadd.s32 %s315, %s319
          %s321 = smul.addr %s320, 128
          %s322 = scalar_lea.hbm %s1, %s321
          %s324 = sshll.u32 %s314, 4
          %s325 = int_to_ptr.vmem [resolvable:$true] %s324
          %327 = dma.hbm_to_vmem [thread:$0]  %s322, 128, %s325, %s311
        $region44: #{tpu_custom_call.1} parent=35 // pred_fallthru
          _
      $region36: #{tpu_custom_call.1} parent=5 // pred_fallthru
        _
      %p328 = scmp.le.s32.totalorder 1, %s20
      %p329 = scmp.lt.s32.totalorder %s20, 3
      %p330 = pnand %p328, %p329
      %p331 = pneg %p330
      // Predicated region
      $region45: #{tpu_custom_call.1} parent=5 // pred_check
        _
      $region46: #{tpu_custom_call.1} parent=5 // pred_check_branch
        %333 = sbr.rel (%p330) target = $region48
      $region47: #{tpu_custom_call.1} parent=5 // pred_region
        %s334 = ssub.s32 %s20, 1
        %s335 = sand.u32 %s47, 1
        %s336 = scalar_lea.sflag [#allocation3], %s335
        %s337 = sand.u32 %s47, 1
        %s338 = smul.addr %s337, 8
        %s339 = scalar_lea.vmem [#allocation2], %s338
        // Predicated region
        $region49: #{tpu_custom_call.1} parent=47 // pred_check
          %p340 = pneg %p60
        $region50: #{tpu_custom_call.1} parent=47 // pred_check_branch
          %342 = sbr.rel (%p340) target = $region52
        $region51: #{tpu_custom_call.1} parent=47 // pred_region
          %343 = dma.done %s336, 128
        $region52: #{tpu_custom_call.1} parent=47 // pred_fallthru
          _
        %s344 = sand.u32 %s25, 1
        %s345 = scalar_lea.sflag [#allocation5], %s344
        %s346 = sand.u32 %s77, 1
        %s347 = smul.addr %s346, 8
        %s348 = scalar_lea.vmem [#allocation4], %s347
        // Predicated region
        $region53: #{tpu_custom_call.1} parent=47 // pred_check
          %p349 = pneg %p90
        $region54: #{tpu_custom_call.1} parent=47 // pred_check_branch
          %351 = sbr.rel (%p349) target = $region56
        $region55: #{tpu_custom_call.1} parent=47 // pred_region
          %352 = dma.done %s345, 128
        $region56: #{tpu_custom_call.1} parent=47 // pred_fallthru
          _
        // Predicated region
        $region57: #{tpu_custom_call.1} parent=47 // pred_check
          %p353 = pneg %p111
        $region58: #{tpu_custom_call.1} parent=47 // pred_check_branch
          %355 = sbr.rel (%p353) target = $region60
        $region59: #{tpu_custom_call.1} parent=47 // pred_region
          %356 = dma.done [#allocation5], 4096
        $region60: #{tpu_custom_call.1} parent=47 // pred_fallthru
          _
        // Predicated region
        $region61: #{tpu_custom_call.1} parent=47 // pred_check
          %p357 = pneg %p132
        $region62: #{tpu_custom_call.1} parent=47 // pred_check_branch
          %359 = sbr.rel (%p357) target = $region64
        $region63: #{tpu_custom_call.1} parent=47 // pred_region
          %360 = dma.done [#allocation8], 4096
        $region64: #{tpu_custom_call.1} parent=47 // pred_fallthru
          _
        // Predicated region
        $region65: #{tpu_custom_call.1} parent=47 // pred_check
          %p361 = pneg %p153
        $region66: #{tpu_custom_call.1} parent=47 // pred_check_branch
          %363 = sbr.rel (%p361) target = $region68
        $region67: #{tpu_custom_call.1} parent=47 // pred_region
          %364 = dma.done [#allocation8], 2048
        $region68: #{tpu_custom_call.1} parent=47 // pred_fallthru
          _
        %s365 = sand.u32 %s47, 1
        %s366 = scalar_lea.sflag [#allocation3], %s365
        %s367 = sand.u32 %s47, 1
        %s368 = smul.addr %s367, 8
        %s369 = scalar_lea.vmem [#allocation2], %s368
        %p370 = pneg %p60
        %p371 = pneg %p57
        %s372 = sand.u32 %s25, 1
        %s373 = scalar_lea.sflag [#allocation5], %s372
        %s374 = sand.u32 %s77, 1
        %s375 = smul.addr %s374, 8
        %s376 = scalar_lea.vmem [#allocation4], %s375
        %p377 = pneg %p90
        %p378 = pneg %p87
        %p379 = pneg %p111
        %p380 = pneg %p108
        %p381 = pneg %p132
        %p382 = pneg %p129
        %p383 = pneg %p153
        %p384 = pneg %p150
        %p385 = pneg %p174
        %p386 = pneg %p171
        %p387 = pneg %p195
        %p388 = pneg %p192
        %p389 = pneg %p223
        %p390 = pneg %p220
        %p391 = scmp.lt.s32.totalorder %s29, 1
        %s392 = scalar_select %p391, %s29, 1
        %p393 = scmp.lt.s32.totalorder %s30, 0
        %s394 = scalar_select %p393, %s30, 0
        %s395 = smul.addr %s392, 16
        %s396 = sadd.s32 %s394, %s395
        %s397 = smul.addr %s396, 8
        %s398 = scalar_lea.vmem %s7, %s397
        %s399 = sadd.s32 %s30, 1
        %p400 = scmp.lt.s32.totalorder %s29, 1
        %s401 = scalar_select %p400, %s29, 1
        %p402 = scmp.lt.s32.totalorder %s30, 0
        %s403 = scalar_select %p402, %s30, 0
        %s404 = smul.addr %s401, 16
        %s405 = sadd.s32 %s403, %s404
        %s406 = smul.addr %s405, 8
        %s407 = scalar_lea.vmem %s7, %s406
        %v409 = vld [vmem:[%s339] sm:$0xff]
        %v410 = vld [vmem:[%s348] sm:$0xff]
        %v411 = vpack.c.bf16 %v409, %v409
        %v412 = vld [vmem:[#allocation6] sm:$0xff]
        %v413 = vld [vmem:[#allocation6 + $0x8] sm:$0xff]
        %v414 = vld [vmem:[#allocation6 + $0x10] sm:$0xff]
        %v415 = vld [vmem:[#allocation6 + $0x18] sm:$0xff]
        %v416 = vld [vmem:[#allocation6 + $0x20] sm:$0xff]
        %v417 = vld [vmem:[#allocation6 + $0x28] sm:$0xff]
        %v418 = vld [vmem:[#allocation6 + $0x30] sm:$0xff]
        %v419 = vld [vmem:[#allocation6 + $0x38] sm:$0xff]
        %v420 = vld [vmem:[#allocation6 + $0x40] sm:$0xff]
        %v421 = vld [vmem:[#allocation6 + $0x48] sm:$0xff]
        %v422 = vld [vmem:[#allocation6 + $0x50] sm:$0xff]
        %v423 = vld [vmem:[#allocation6 + $0x58] sm:$0xff]
        %v424 = vld [vmem:[#allocation6 + $0x60] sm:$0xff]
        %v425 = vld [vmem:[#allocation6 + $0x68] sm:$0xff]
        %v426 = vld [vmem:[#allocation6 + $0x70] sm:$0xff]
        %v427 = vld [vmem:[#allocation6 + $0x78] sm:$0xff]
        %v428 = vunpack.c.l.bf16 %v411
        %v429 = vsub.f32 %v409, %v428
        %v430 = vpack.c.bf16 %v429, %v429
        %v431 = vld [vmem:[#allocation7] sm:$0xff]
        %v432 = vld [vmem:[#allocation7 + $0x8] sm:$0xff]
        %v433 = vld [vmem:[#allocation7 + $0x10] sm:$0xff]
        %v434 = vld [vmem:[#allocation7 + $0x18] sm:$0xff]
        %v435 = vld [vmem:[#allocation7 + $0x20] sm:$0xff]
        %v436 = vld [vmem:[#allocation7 + $0x28] sm:$0xff]
        %v437 = vld [vmem:[#allocation7 + $0x30] sm:$0xff]
        %v438 = vld [vmem:[#allocation7 + $0x38] sm:$0xff]
        %v439 = vld [vmem:[#allocation7 + $0x40] sm:$0xff]
        %v440 = vld [vmem:[#allocation7 + $0x48] sm:$0xff]
        %v441 = vld [vmem:[#allocation7 + $0x50] sm:$0xff]
        %v442 = vld [vmem:[#allocation7 + $0x58] sm:$0xff]
        %v443 = vld [vmem:[#allocation7 + $0x60] sm:$0xff]
        %v444 = vld [vmem:[#allocation7 + $0x68] sm:$0xff]
        %v445 = vld [vmem:[#allocation7 + $0x70] sm:$0xff]
        %v446 = vld [vmem:[#allocation7 + $0x78] sm:$0xff]
        %v463 = vunpack.c.l.b16 %v431
        %v464 = vunpack.c.h.b16 %v431
        %v465 = vunpack.c.l.b16 %v432
        %v466 = vunpack.c.h.b16 %v432
        %v467 = vunpack.c.l.b16 %v433
        %v468 = vunpack.c.h.b16 %v433
        %v469 = vunpack.c.l.b16 %v434
        %v470 = vunpack.c.h.b16 %v434
        %v471 = vunpack.c.l.b16 %v435
        %v472 = vunpack.c.h.b16 %v435
        %v473 = vunpack.c.l.b16 %v436
        %v474 = vunpack.c.h.b16 %v436
        %v475 = vunpack.c.l.b16 %v437
        %v476 = vunpack.c.h.b16 %v437
        %v477 = vunpack.c.l.b16 %v438
        %v478 = vunpack.c.h.b16 %v438
        %v479 = vunpack.c.l.b16 %v439
        %v480 = vunpack.c.h.b16 %v439
        %v481 = vunpack.c.l.b16 %v440
        %v482 = vunpack.c.h.b16 %v440
        %v483 = vunpack.c.l.b16 %v441
        %v484 = vunpack.c.h.b16 %v441
        %v485 = vunpack.c.l.b16 %v442
        %v486 = vunpack.c.h.b16 %v442
        %v487 = vunpack.c.l.b16 %v443
        %v488 = vunpack.c.h.b16 %v443
        %v489 = vunpack.c.l.b16 %v444
        %v490 = vunpack.c.h.b16 %v444
        %v491 = vunpack.c.l.b16 %v445
        %v492 = vunpack.c.h.b16 %v445
        %v493 = vunpack.c.l.b16 %v446
        %v494 = vunpack.c.h.b16 %v446
        %v495 = vpack.c.b16 %v465, %v463
        %v496 = vpack.c.b16 %v466, %v464
        %v497 = vpack.c.b16 %v469, %v467
        %v498 = vpack.c.b16 %v470, %v468
        %v499 = vpack.c.b16 %v473, %v471
        %v500 = vpack.c.b16 %v474, %v472
        %v501 = vpack.c.b16 %v477, %v475
        %v502 = vpack.c.b16 %v478, %v476
        %v503 = vpack.c.b16 %v481, %v479
        %v504 = vpack.c.b16 %v482, %v480
        %v505 = vpack.c.b16 %v485, %v483
        %v506 = vpack.c.b16 %v486, %v484
        %v507 = vpack.c.b16 %v489, %v487
        %v508 = vpack.c.b16 %v490, %v488
        %v509 = vpack.c.b16 %v493, %v491
        %v510 = vpack.c.b16 %v494, %v492
        %527 = vmatprep.subr.bf16.mxu0 %v510
        %528 = vmatpush1.bf16.msra.mxu0 %v509
        %529 = vmatprep.subr.bf16.mxu0 %v508
        %530 = vmatpush1.bf16.msra.mxu0 %v507
        %531 = vmatprep.subr.bf16.mxu0 %v506
        %532 = vmatpush1.bf16.msra.mxu0 %v505
        %533 = vmatprep.subr.bf16.mxu0 %v504
        %534 = vmatpush1.bf16.msra.mxu0 %v503
        %535 = vmatprep.subr.bf16.mxu0 %v502
        %536 = vmatpush1.bf16.msra.mxu0 %v501
        %537 = vmatprep.subr.bf16.mxu0 %v500
        %538 = vmatpush1.bf16.msra.mxu0 %v499
        %539 = vmatprep.subr.bf16.mxu0 %v498
        %540 = vmatpush1.bf16.msra.mxu0 %v497
        %541 = vmatprep.subr.bf16.mxu0 %v496
        %542 = vmatpush1.bf16.msra.mxu0 %v495
        %543 = vmatprep.subr.bf16.mxu0 0
        %544 = vmatpush2.bf16.msra.mxu0 0
        %545 = vmatprep.subr.bf16.mxu0 0
        %546 = vmatpush2.bf16.msra.mxu0 0
        %547 = vmatprep.subr.bf16.mxu0 0
        %548 = vmatpush2.bf16.msra.mxu0 0
        %549 = vmatprep.subr.bf16.mxu0 0
        %550 = vmatpush2.bf16.msra.mxu0 0
        %551 = vmatprep.subr.bf16.mxu0 0
        %552 = vmatpush2.bf16.msra.mxu0 0
        %553 = vmatprep.subr.bf16.mxu0 0
        %554 = vmatpush2.bf16.msra.mxu0 0
        %555 = vmatprep.subr.bf16.mxu0 0
        %556 = vmatpush2.bf16.msra.mxu0 0
        %557 = vmatprep.subr.bf16.mxu0 0
        %558 = vmatpush2.bf16.msra.mxu0 0
        %559 = vmatprep.mubr.bf16.mxu0 0
        %560 = vmatmul.mubr.bf16.gmra.mxu0 %v411
        %v561 = vpop.f32.mrf.mxu0
        %v562 = vadd.f32 0.0, %v561
        %v563 = vpop.f32.mrf.mxu0
        %v564 = vadd.f32 0.0, %v563
        %v565 = vpop.f32.mrf.mxu0
        %v566 = vpop.f32.mrf.mxu0
        %567 = vdwg.mxu0
        %v584 = vunpack.c.l.b16 %v412
        %v585 = vunpack.c.h.b16 %v412
        %v586 = vunpack.c.l.b16 %v413
        %v587 = vunpack.c.h.b16 %v413
        %v588 = vunpack.c.l.b16 %v414
        %v589 = vunpack.c.h.b16 %v414
        %v590 = vunpack.c.l.b16 %v415
        %v591 = vunpack.c.h.b16 %v415
        %v592 = vunpack.c.l.b16 %v416
        %v593 = vunpack.c.h.b16 %v416
        %v594 = vunpack.c.l.b16 %v417
        %v595 = vunpack.c.h.b16 %v417
        %v596 = vunpack.c.l.b16 %v418
        %v597 = vunpack.c.h.b16 %v418
        %v598 = vunpack.c.l.b16 %v419
        %v599 = vunpack.c.h.b16 %v419
        %v600 = vunpack.c.l.b16 %v420
        %v601 = vunpack.c.h.b16 %v420
        %v602 = vunpack.c.l.b16 %v421
        %v603 = vunpack.c.h.b16 %v421
        %v604 = vunpack.c.l.b16 %v422
        %v605 = vunpack.c.h.b16 %v422
        %v606 = vunpack.c.l.b16 %v423
        %v607 = vunpack.c.h.b16 %v423
        %v608 = vunpack.c.l.b16 %v424
        %v609 = vunpack.c.h.b16 %v424
        %v610 = vunpack.c.l.b16 %v425
        %v611 = vunpack.c.h.b16 %v425
        %v612 = vunpack.c.l.b16 %v426
        %v613 = vunpack.c.h.b16 %v426
        %v614 = vunpack.c.l.b16 %v427
        %v615 = vunpack.c.h.b16 %v427
        %v616 = vpack.c.b16 %v586, %v584
        %v617 = vpack.c.b16 %v587, %v585
        %v618 = vpack.c.b16 %v590, %v588
        %v619 = vpack.c.b16 %v591, %v589
        %v620 = vpack.c.b16 %v594, %v592
        %v621 = vpack.c.b16 %v595, %v593
        %v622 = vpack.c.b16 %v598, %v596
        %v623 = vpack.c.b16 %v599, %v597
        %v624 = vpack.c.b16 %v602, %v600
        %v625 = vpack.c.b16 %v603, %v601
        %v626 = vpack.c.b16 %v606, %v604
        %v627 = vpack.c.b16 %v607, %v605
        %v628 = vpack.c.b16 %v610, %v608
        %v629 = vpack.c.b16 %v611, %v609
        %v630 = vpack.c.b16 %v614, %v612
        %v631 = vpack.c.b16 %v615, %v613
        %648 = vmatprep.subr.bf16.mxu0 %v631
        %649 = vmatpush1.bf16.msra.mxu0 %v630
        %650 = vmatprep.subr.bf16.mxu0 %v629
        %651 = vmatpush1.bf16.msra.mxu0 %v628
        %652 = vmatprep.subr.bf16.mxu0 %v627
        %653 = vmatpush1.bf16.msra.mxu0 %v626
        %654 = vmatprep.subr.bf16.mxu0 %v625
        %655 = vmatpush1.bf16.msra.mxu0 %v624
        %656 = vmatprep.subr.bf16.mxu0 %v623
        %657 = vmatpush1.bf16.msra.mxu0 %v622
        %658 = vmatprep.subr.bf16.mxu0 %v621
        %659 = vmatpush1.bf16.msra.mxu0 %v620
        %660 = vmatprep.subr.bf16.mxu0 %v619
        %661 = vmatpush1.bf16.msra.mxu0 %v618
        %662 = vmatprep.subr.bf16.mxu0 %v617
        %663 = vmatpush1.bf16.msra.mxu0 %v616
        %664 = vmatprep.subr.bf16.mxu0 0
        %665 = vmatpush2.bf16.msra.mxu0 0
        %666 = vmatprep.subr.bf16.mxu0 0
        %667 = vmatpush2.bf16.msra.mxu0 0
        %668 = vmatprep.subr.bf16.mxu0 0
        %669 = vmatpush2.bf16.msra.mxu0 0
        %670 = vmatprep.subr.bf16.mxu0 0
        %671 = vmatpush2.bf16.msra.mxu0 0
        %672 = vmatprep.subr.bf16.mxu0 0
        %673 = vmatpush2.bf16.msra.mxu0 0
        %674 = vmatprep.subr.bf16.mxu0 0
        %675 = vmatpush2.bf16.msra.mxu0 0
        %676 = vmatprep.subr.bf16.mxu0 0
        %677 = vmatpush2.bf16.msra.mxu0 0
        %678 = vmatprep.subr.bf16.mxu0 0
        %679 = vmatpush2.bf16.msra.mxu0 0
        %680 = vmatprep.mubr.bf16.mxu0 0
        %681 = vmatmul.mubr.bf16.gmra.mxu0 %v411
        %v682 = vpop.f32.mrf.mxu0
        %v683 = vadd.f32 %v562, %v682
        %v684 = vpop.f32.mrf.mxu0
        %v685 = vadd.f32 %v564, %v684
        %v686 = vpop.f32.mrf.mxu0
        %v687 = vpop.f32.mrf.mxu0
        %688 = vdwg.mxu0
        %689 = vmatprep.subr.bf16.mxu0 %v631
        %690 = vmatpush1.bf16.msra.mxu0 %v630
        %691 = vmatprep.subr.bf16.mxu0 %v629
        %692 = vmatpush1.bf16.msra.mxu0 %v628
        %693 = vmatprep.subr.bf16.mxu0 %v627
        %694 = vmatpush1.bf16.msra.mxu0 %v626
        %695 = vmatprep.subr.bf16.mxu0 %v625
        %696 = vmatpush1.bf16.msra.mxu0 %v624
        %697 = vmatprep.subr.bf16.mxu0 %v623
        %698 = vmatpush1.bf16.msra.mxu0 %v622
        %699 = vmatprep.subr.bf16.mxu0 %v621
        %700 = vmatpush1.bf16.msra.mxu0 %v620
        %701 = vmatprep.subr.bf16.mxu0 %v619
        %702 = vmatpush1.bf16.msra.mxu0 %v618
        %703 = vmatprep.subr.bf16.mxu0 %v617
        %704 = vmatpush1.bf16.msra.mxu0 %v616
        %705 = vmatprep.subr.bf16.mxu0 0
        %706 = vmatpush2.bf16.msra.mxu0 0
        %707 = vmatprep.subr.bf16.mxu0 0
        %708 = vmatpush2.bf16.msra.mxu0 0
        %709 = vmatprep.subr.bf16.mxu0 0
        %710 = vmatpush2.bf16.msra.mxu0 0
        %711 = vmatprep.subr.bf16.mxu0 0
        %712 = vmatpush2.bf16.msra.mxu0 0
        %713 = vmatprep.subr.bf16.mxu0 0
        %714 = vmatpush2.bf16.msra.mxu0 0
        %715 = vmatprep.subr.bf16.mxu0 0
        %716 = vmatpush2.bf16.msra.mxu0 0
        %717 = vmatprep.subr.bf16.mxu0 0
        %718 = vmatpush2.bf16.msra.mxu0 0
        %719 = vmatprep.subr.bf16.mxu0 0
        %720 = vmatpush2.bf16.msra.mxu0 0
        %721 = vmatprep.mubr.bf16.mxu0 0
        %722 = vmatmul.mubr.bf16.gmra.mxu0 %v430
        %v723 = vpop.f32.mrf.mxu0
        %v724 = vadd.f32 0.0, %v723
        %v725 = vpop.f32.mrf.mxu0
        %v726 = vadd.f32 0.0, %v725
        %v727 = vpop.f32.mrf.mxu0
        %v728 = vpop.f32.mrf.mxu0
        %729 = vdwg.mxu0
        %v730 = vadd.f32 %v683, %v724
        %v731 = vadd.f32 %v685, %v726
        %v733 = vrot.slane %v409, 1
        %v736 = vrot.slane %v410, 1
        %vm738 = vcmask 1046528
        %v739 = vsel %vm738, %v733, %v736
        %v740 = vpack.c.bf16 %v739, %v739
        %v741 = vld [vmem:[#allocation6 + $0x80] sm:$0xff]
        %v742 = vld [vmem:[#allocation6 + $0x88] sm:$0xff]
        %v743 = vld [vmem:[#allocation6 + $0x90] sm:$0xff]
        %v744 = vld [vmem:[#allocation6 + $0x98] sm:$0xff]
        %v745 = vld [vmem:[#allocation6 + $0xa0] sm:$0xff]
        %v746 = vld [vmem:[#allocation6 + $0xa8] sm:$0xff]
        %v747 = vld [vmem:[#allocation6 + $0xb0] sm:$0xff]
        %v748 = vld [vmem:[#allocation6 + $0xb8] sm:$0xff]
        %v749 = vld [vmem:[#allocation6 + $0xc0] sm:$0xff]
        %v750 = vld [vmem:[#allocation6 + $0xc8] sm:$0xff]
        %v751 = vld [vmem:[#allocation6 + $0xd0] sm:$0xff]
        %v752 = vld [vmem:[#allocation6 + $0xd8] sm:$0xff]
        %v753 = vld [vmem:[#allocation6 + $0xe0] sm:$0xff]
        %v754 = vld [vmem:[#allocation6 + $0xe8] sm:$0xff]
        %v755 = vld [vmem:[#allocation6 + $0xf0] sm:$0xff]
        %v756 = vld [vmem:[#allocation6 + $0xf8] sm:$0xff]
        %v757 = vunpack.c.l.bf16 %v740
        %v758 = vsub.f32 %v739, %v757
        %v759 = vpack.c.bf16 %v758, %v758
        %v760 = vld [vmem:[#allocation7 + $0x80] sm:$0xff]
        %v761 = vld [vmem:[#allocation7 + $0x88] sm:$0xff]
        %v762 = vld [vmem:[#allocation7 + $0x90] sm:$0xff]
        %v763 = vld [vmem:[#allocation7 + $0x98] sm:$0xff]
        %v764 = vld [vmem:[#allocation7 + $0xa0] sm:$0xff]
        %v765 = vld [vmem:[#allocation7 + $0xa8] sm:$0xff]
        %v766 = vld [vmem:[#allocation7 + $0xb0] sm:$0xff]
        %v767 = vld [vmem:[#allocation7 + $0xb8] sm:$0xff]
        %v768 = vld [vmem:[#allocation7 + $0xc0] sm:$0xff]
        %v769 = vld [vmem:[#allocation7 + $0xc8] sm:$0xff]
        %v770 = vld [vmem:[#allocation7 + $0xd0] sm:$0xff]
        %v771 = vld [vmem:[#allocation7 + $0xd8] sm:$0xff]
        %v772 = vld [vmem:[#allocation7 + $0xe0] sm:$0xff]
        %v773 = vld [vmem:[#allocation7 + $0xe8] sm:$0xff]
        %v774 = vld [vmem:[#allocation7 + $0xf0] sm:$0xff]
        %v775 = vld [vmem:[#allocation7 + $0xf8] sm:$0xff]
        %v792 = vunpack.c.l.b16 %v760
        %v793 = vunpack.c.h.b16 %v760
        %v794 = vunpack.c.l.b16 %v761
        %v795 = vunpack.c.h.b16 %v761
        %v796 = vunpack.c.l.b16 %v762
        %v797 = vunpack.c.h.b16 %v762
        %v798 = vunpack.c.l.b16 %v763
        %v799 = vunpack.c.h.b16 %v763
        %v800 = vunpack.c.l.b16 %v764
        %v801 = vunpack.c.h.b16 %v764
        %v802 = vunpack.c.l.b16 %v765
        %v803 = vunpack.c.h.b16 %v765
        %v804 = vunpack.c.l.b16 %v766
        %v805 = vunpack.c.h.b16 %v766
        %v806 = vunpack.c.l.b16 %v767
        %v807 = vunpack.c.h.b16 %v767
        %v808 = vunpack.c.l.b16 %v768
        %v809 = vunpack.c.h.b16 %v768
        %v810 = vunpack.c.l.b16 %v769
        %v811 = vunpack.c.h.b16 %v769
        %v812 = vunpack.c.l.b16 %v770
        %v813 = vunpack.c.h.b16 %v770
        %v814 = vunpack.c.l.b16 %v771
        %v815 = vunpack.c.h.b16 %v771
        %v816 = vunpack.c.l.b16 %v772
        %v817 = vunpack.c.h.b16 %v772
        %v818 = vunpack.c.l.b16 %v773
        %v819 = vunpack.c.h.b16 %v773
        %v820 = vunpack.c.l.b16 %v774
        %v821 = vunpack.c.h.b16 %v774
        %v822 = vunpack.c.l.b16 %v775
        %v823 = vunpack.c.h.b16 %v775
        %v824 = vpack.c.b16 %v794, %v792
        %v825 = vpack.c.b16 %v795, %v793
        %v826 = vpack.c.b16 %v798, %v796
        %v827 = vpack.c.b16 %v799, %v797
        %v828 = vpack.c.b16 %v802, %v800
        %v829 = vpack.c.b16 %v803, %v801
        %v830 = vpack.c.b16 %v806, %v804
        %v831 = vpack.c.b16 %v807, %v805
        %v832 = vpack.c.b16 %v810, %v808
        %v833 = vpack.c.b16 %v811, %v809
        %v834 = vpack.c.b16 %v814, %v812
        %v835 = vpack.c.b16 %v815, %v813
        %v836 = vpack.c.b16 %v818, %v816
        %v837 = vpack.c.b16 %v819, %v817
        %v838 = vpack.c.b16 %v822, %v820
        %v839 = vpack.c.b16 %v823, %v821
        %856 = vmatprep.subr.bf16.mxu0 %v839
        %857 = vmatpush1.bf16.msra.mxu0 %v838
        %858 = vmatprep.subr.bf16.mxu0 %v837
        %859 = vmatpush1.bf16.msra.mxu0 %v836
        %860 = vmatprep.subr.bf16.mxu0 %v835
        %861 = vmatpush1.bf16.msra.mxu0 %v834
        %862 = vmatprep.subr.bf16.mxu0 %v833
        %863 = vmatpush1.bf16.msra.mxu0 %v832
        %864 = vmatprep.subr.bf16.mxu0 %v831
        %865 = vmatpush1.bf16.msra.mxu0 %v830
        %866 = vmatprep.subr.bf16.mxu0 %v829
        %867 = vmatpush1.bf16.msra.mxu0 %v828
        %868 = vmatprep.subr.bf16.mxu0 %v827
        %869 = vmatpush1.bf16.msra.mxu0 %v826
        %870 = vmatprep.subr.bf16.mxu0 %v825
        %871 = vmatpush1.bf16.msra.mxu0 %v824
        %872 = vmatprep.subr.bf16.mxu0 0
        %873 = vmatpush2.bf16.msra.mxu0 0
        %874 = vmatprep.subr.bf16.mxu0 0
        %875 = vmatpush2.bf16.msra.mxu0 0
        %876 = vmatprep.subr.bf16.mxu0 0
        %877 = vmatpush2.bf16.msra.mxu0 0
        %878 = vmatprep.subr.bf16.mxu0 0
        %879 = vmatpush2.bf16.msra.mxu0 0
        %880 = vmatprep.subr.bf16.mxu0 0
        %881 = vmatpush2.bf16.msra.mxu0 0
        %882 = vmatprep.subr.bf16.mxu0 0
        %883 = vmatpush2.bf16.msra.mxu0 0
        %884 = vmatprep.subr.bf16.mxu0 0
        %885 = vmatpush2.bf16.msra.mxu0 0
        %886 = vmatprep.subr.bf16.mxu0 0
        %887 = vmatpush2.bf16.msra.mxu0 0
        %888 = vmatprep.mubr.bf16.mxu0 0
        %889 = vmatmul.mubr.bf16.gmra.mxu0 %v740
        %v890 = vpop.f32.mrf.mxu0
        %v891 = vadd.f32 0.0, %v890
        %v892 = vpop.f32.mrf.mxu0
        %v893 = vadd.f32 0.0, %v892
        %v894 = vpop.f32.mrf.mxu0
        %v895 = vpop.f32.mrf.mxu0
        %896 = vdwg.mxu0
        %v913 = vunpack.c.l.b16 %v741
        %v914 = vunpack.c.h.b16 %v741
        %v915 = vunpack.c.l.b16 %v742
        %v916 = vunpack.c.h.b16 %v742
        %v917 = vunpack.c.l.b16 %v743
        %v918 = vunpack.c.h.b16 %v743
        %v919 = vunpack.c.l.b16 %v744
        %v920 = vunpack.c.h.b16 %v744
        %v921 = vunpack.c.l.b16 %v745
        %v922 = vunpack.c.h.b16 %v745
        %v923 = vunpack.c.l.b16 %v746
        %v924 = vunpack.c.h.b16 %v746
        %v925 = vunpack.c.l.b16 %v747
        %v926 = vunpack.c.h.b16 %v747
        %v927 = vunpack.c.l.b16 %v748
        %v928 = vunpack.c.h.b16 %v748
        %v929 = vunpack.c.l.b16 %v749
        %v930 = vunpack.c.h.b16 %v749
        %v931 = vunpack.c.l.b16 %v750
        %v932 = vunpack.c.h.b16 %v750
        %v933 = vunpack.c.l.b16 %v751
        %v934 = vunpack.c.h.b16 %v751
        %v935 = vunpack.c.l.b16 %v752
        %v936 = vunpack.c.h.b16 %v752
        %v937 = vunpack.c.l.b16 %v753
        %v938 = vunpack.c.h.b16 %v753
        %v939 = vunpack.c.l.b16 %v754
        %v940 = vunpack.c.h.b16 %v754
        %v941 = vunpack.c.l.b16 %v755
        %v942 = vunpack.c.h.b16 %v755
        %v943 = vunpack.c.l.b16 %v756
        %v944 = vunpack.c.h.b16 %v756
        %v945 = vpack.c.b16 %v915, %v913
        %v946 = vpack.c.b16 %v916, %v914
        %v947 = vpack.c.b16 %v919, %v917
        %v948 = vpack.c.b16 %v920, %v918
        %v949 = vpack.c.b16 %v923, %v921
        %v950 = vpack.c.b16 %v924, %v922
        %v951 = vpack.c.b16 %v927, %v925
        %v952 = vpack.c.b16 %v928, %v926
        %v953 = vpack.c.b16 %v931, %v929
        %v954 = vpack.c.b16 %v932, %v930
        %v955 = vpack.c.b16 %v935, %v933
        %v956 = vpack.c.b16 %v936, %v934
        %v957 = vpack.c.b16 %v939, %v937
        %v958 = vpack.c.b16 %v940, %v938
        %v959 = vpack.c.b16 %v943, %v941
        %v960 = vpack.c.b16 %v944, %v942
        %977 = vmatprep.subr.bf16.mxu0 %v960
        %978 = vmatpush1.bf16.msra.mxu0 %v959
        %979 = vmatprep.subr.bf16.mxu0 %v958
        %980 = vmatpush1.bf16.msra.mxu0 %v957
        %981 = vmatprep.subr.bf16.mxu0 %v956
        %982 = vmatpush1.bf16.msra.mxu0 %v955
        %983 = vmatprep.subr.bf16.mxu0 %v954
        %984 = vmatpush1.bf16.msra.mxu0 %v953
        %985 = vmatprep.subr.bf16.mxu0 %v952
        %986 = vmatpush1.bf16.msra.mxu0 %v951
        %987 = vmatprep.subr.bf16.mxu0 %v950
        %988 = vmatpush1.bf16.msra.mxu0 %v949
        %989 = vmatprep.subr.bf16.mxu0 %v948
        %990 = vmatpush1.bf16.msra.mxu0 %v947
        %991 = vmatprep.subr.bf16.mxu0 %v946
        %992 = vmatpush1.bf16.msra.mxu0 %v945
        %993 = vmatprep.subr.bf16.mxu0 0
        %994 = vmatpush2.bf16.msra.mxu0 0
        %995 = vmatprep.subr.bf16.mxu0 0
        %996 = vmatpush2.bf16.msra.mxu0 0
        %997 = vmatprep.subr.bf16.mxu0 0
        %998 = vmatpush2.bf16.msra.mxu0 0
        %999 = vmatprep.subr.bf16.mxu0 0
        %1000 = vmatpush2.bf16.msra.mxu0 0
        %1001 = vmatprep.subr.bf16.mxu0 0
        %1002 = vmatpush2.bf16.msra.mxu0 0
        %1003 = vmatprep.subr.bf16.mxu0 0
        %1004 = vmatpush2.bf16.msra.mxu0 0
        %1005 = vmatprep.subr.bf16.mxu0 0
        %1006 = vmatpush2.bf16.msra.mxu0 0
        %1007 = vmatprep.subr.bf16.mxu0 0
        %1008 = vmatpush2.bf16.msra.mxu0 0
        %1009 = vmatprep.mubr.bf16.mxu0 0
        %1010 = vmatmul.mubr.bf16.gmra.mxu0 %v740
        %v1011 = vpop.f32.mrf.mxu0
        %v1012 = vadd.f32 %v891, %v1011
        %v1013 = vpop.f32.mrf.mxu0
        %v1014 = vadd.f32 %v893, %v1013
        %v1015 = vpop.f32.mrf.mxu0
        %v1016 = vpop.f32.mrf.mxu0
        %1017 = vdwg.mxu0
        %1018 = vmatprep.subr.bf16.mxu0 %v960
        %1019 = vmatpush1.bf16.msra.mxu0 %v959
        %1020 = vmatprep.subr.bf16.mxu0 %v958
        %1021 = vmatpush1.bf16.msra.mxu0 %v957
        %1022 = vmatprep.subr.bf16.mxu0 %v956
        %1023 = vmatpush1.bf16.msra.mxu0 %v955
        %1024 = vmatprep.subr.bf16.mxu0 %v954
        %1025 = vmatpush1.bf16.msra.mxu0 %v953
        %1026 = vmatprep.subr.bf16.mxu0 %v952
        %1027 = vmatpush1.bf16.msra.mxu0 %v951
        %1028 = vmatprep.subr.bf16.mxu0 %v950
        %1029 = vmatpush1.bf16.msra.mxu0 %v949
        %1030 = vmatprep.subr.bf16.mxu0 %v948
        %1031 = vmatpush1.bf16.msra.mxu0 %v947
        %1032 = vmatprep.subr.bf16.mxu0 %v946
        %1033 = vmatpush1.bf16.msra.mxu0 %v945
        %1034 = vmatprep.subr.bf16.mxu0 0
        %1035 = vmatpush2.bf16.msra.mxu0 0
        %1036 = vmatprep.subr.bf16.mxu0 0
        %1037 = vmatpush2.bf16.msra.mxu0 0
        %1038 = vmatprep.subr.bf16.mxu0 0
        %1039 = vmatpush2.bf16.msra.mxu0 0
        %1040 = vmatprep.subr.bf16.mxu0 0
        %1041 = vmatpush2.bf16.msra.mxu0 0
        %1042 = vmatprep.subr.bf16.mxu0 0
        %1043 = vmatpush2.bf16.msra.mxu0 0
        %1044 = vmatprep.subr.bf16.mxu0 0
        %1045 = vmatpush2.bf16.msra.mxu0 0
        %1046 = vmatprep.subr.bf16.mxu0 0
        %1047 = vmatpush2.bf16.msra.mxu0 0
        %1048 = vmatprep.subr.bf16.mxu0 0
        %1049 = vmatpush2.bf16.msra.mxu0 0
        %1050 = vmatprep.mubr.bf16.mxu0 0
        %1051 = vmatmul.mubr.bf16.gmra.mxu0 %v759
        %v1052 = vpop.f32.mrf.mxu0
        %v1053 = vadd.f32 0.0, %v1052
        %v1054 = vpop.f32.mrf.mxu0
        %v1055 = vadd.f32 0.0, %v1054
        %v1056 = vpop.f32.mrf.mxu0
        %v1057 = vpop.f32.mrf.mxu0
        %1058 = vdwg.mxu0
        %v1059 = vadd.f32 %v1012, %v1053
        %v1060 = vadd.f32 %v1014, %v1055
        %v1061 = vadd.f32 %v730, %v1059
        %v1062 = vadd.f32 %v731, %v1060
        %v1063 = vld [vmem:[#allocation9] sm:$0xff]
        %v1064 = vld [vmem:[#allocation9 + $0x8] sm:$0xff]
        %v1065 = vld [vmem:[#allocation9 + $0x10] sm:$0xff]
        %v1066 = vld [vmem:[#allocation9 + $0x18] sm:$0xff]
        %v1067 = vld [vmem:[#allocation9 + $0x20] sm:$0xff]
        %v1068 = vld [vmem:[#allocation9 + $0x28] sm:$0xff]
        %v1069 = vld [vmem:[#allocation9 + $0x30] sm:$0xff]
        %v1070 = vld [vmem:[#allocation9 + $0x38] sm:$0xff]
        %v1071 = vld [vmem:[#allocation9 + $0x40] sm:$0xff]
        %v1072 = vld [vmem:[#allocation9 + $0x48] sm:$0xff]
        %v1073 = vld [vmem:[#allocation9 + $0x50] sm:$0xff]
        %v1074 = vld [vmem:[#allocation9 + $0x58] sm:$0xff]
        %v1075 = vld [vmem:[#allocation9 + $0x60] sm:$0xff]
        %v1076 = vld [vmem:[#allocation9 + $0x68] sm:$0xff]
        %v1077 = vld [vmem:[#allocation9 + $0x70] sm:$0xff]
        %v1078 = vld [vmem:[#allocation9 + $0x78] sm:$0xff]
        %v1079 = vld [vmem:[%s5] sm:$0x1]
        %v1080 = vld [vmem:[%s6] sm:$0x1]
        %v1082 = vlaneseq
        %v1083 = vshrl.u32 %v1082, 7
        %v1084 = vsub.s32 0, %v1083
        %v1085 = vrot.slane %v1080, %v1084
        %v1087 = vmul.f32 %v1062, %v1085
        %v1088 = vmul.f32 %v1061, %v1061
        %v1089 = vmul.f32 %v1087, %v1087
        %v1090 = vadd.f32 %v1088, %v1089
        %v1091 = vrsqrt.pop %v1090
        %v1092 = vmul.f32 %v1090, %v1091
        %vm1093 = vcmp.eq.f32.partialorder %v1090, inf
        %v1094 = vsel %vm1093, %v1090, %v1092
        %vm1095 = vcmp.eq.f32.partialorder %v1090, 0.0
        %v1096 = vand.u32 %v1090, 2147483648
        %v1097 = vsel %vm1095, %v1096, %v1094
        %v1098 = vand.u32 2147483647, %v1062
        %1100 = vset.pattern.permute.xlu0 0
        %1101 = vperm.xlu0 %1100, %v1098
        %v1102 = vpop.permute.xlu0 %1101
        %v1105 = vlaneseq
        %v1106 = vshrl.u32 %v1105, 7
        %v1107 = vsub.s32 0, %v1106
        %v1108 = vrot.slane %v1079, %v1107
        %v1110 = vmul.f32 %v1102, %v1108
        %1111 = vmatprep.subr.mxu0 0.0
        %1112 = vmatpush1.msra.mxu0 %v1078
        %1113 = vmatprep.subr.mxu0 0.0
        %1114 = vmatpush1.msra.mxu0 %v1077
        %1115 = vmatprep.subr.mxu0 0.0
        %1116 = vmatpush1.msra.mxu0 %v1076
        %1117 = vmatprep.subr.mxu0 0.0
        %1118 = vmatpush1.msra.mxu0 %v1075
        %1119 = vmatprep.subr.mxu0 0.0
        %1120 = vmatpush1.msra.mxu0 %v1074
        %1121 = vmatprep.subr.mxu0 0.0
        %1122 = vmatpush1.msra.mxu0 %v1073
        %1123 = vmatprep.subr.mxu0 0.0
        %1124 = vmatpush1.msra.mxu0 %v1072
        %1125 = vmatprep.subr.mxu0 0.0
        %1126 = vmatpush1.msra.mxu0 %v1071
        %1127 = vmatprep.subr.mxu0 0.0
        %1128 = vmatpush1.msra.mxu0 %v1070
        %1129 = vmatprep.subr.mxu0 0.0
        %1130 = vmatpush1.msra.mxu0 %v1069
        %1131 = vmatprep.subr.mxu0 0.0
        %1132 = vmatpush1.msra.mxu0 %v1068
        %1133 = vmatprep.subr.mxu0 0.0
        %1134 = vmatpush1.msra.mxu0 %v1067
        %1135 = vmatprep.subr.mxu0 0.0
        %1136 = vmatpush1.msra.mxu0 %v1066
        %1137 = vmatprep.subr.mxu0 0.0
        %1138 = vmatpush1.msra.mxu0 %v1065
        %1139 = vmatprep.subr.mxu0 0.0
        %1140 = vmatpush1.msra.mxu0 %v1064
        %1141 = vmatprep.subr.mxu0 0.0
        %1142 = vmatpush1.msra.mxu0 %v1063
        %1143 = vmatprep.subr.mxu0 0.0
        %1144 = vmatpush2.msra.mxu0 0.0
        %1145 = vmatprep.subr.mxu0 0.0
        %1146 = vmatpush2.msra.mxu0 0.0
        %1147 = vmatprep.subr.mxu0 0.0
        %1148 = vmatpush2.msra.mxu0 0.0
        %1149 = vmatprep.subr.mxu0 0.0
        %1150 = vmatpush2.msra.mxu0 0.0
        %1151 = vmatprep.subr.mxu0 0.0
        %1152 = vmatpush2.msra.mxu0 0.0
        %1153 = vmatprep.subr.mxu0 0.0
        %1154 = vmatpush2.msra.mxu0 0.0
        %1155 = vmatprep.subr.mxu0 0.0
        %1156 = vmatpush2.msra.mxu0 0.0
        %1157 = vmatprep.subr.mxu0 0.0
        %1158 = vmatpush2.msra.mxu0 0.0
        %1159 = vmatprep.subr.mxu0 0.0
        %1160 = vmatpush2.msra.mxu0 0.0
        %1161 = vmatprep.subr.mxu0 0.0
        %1162 = vmatpush2.msra.mxu0 0.0
        %1163 = vmatprep.subr.mxu0 0.0
        %1164 = vmatpush2.msra.mxu0 0.0
        %1165 = vmatprep.subr.mxu0 0.0
        %1166 = vmatpush2.msra.mxu0 0.0
        %1167 = vmatprep.subr.mxu0 0.0
        %1168 = vmatpush2.msra.mxu0 0.0
        %1169 = vmatprep.subr.mxu0 0.0
        %1170 = vmatpush2.msra.mxu0 0.0
        %1171 = vmatprep.subr.mxu0 0.0
        %1172 = vmatpush2.msra.mxu0 0.0
        %1173 = vmatprep.subr.mxu0 0.0
        %1174 = vmatpush2.msra.mxu0 0.0
        %1175 = vmatprep.mubr.f32.mxu0 0.0
        %1176 = vmatmul.mubr.f32.gmra.mxu0 %v1097
        %v1177 = vpop.f32.mrf.mxu0
        %v1178 = vadd.f32 %v1110, %v1177
        %v1179 = vpop.f32.mrf.mxu0
        %1180 = vdwg.mxu0
        %1181 = vxpose.xlu0.b32.start [1/16] %v1178, 128
        %1182 = vxpose.xlu0.b32.cont [2/16] 0.0, 128
        %1183 = vxpose.xlu0.b32.cont [3/16] 0.0, 128
        %1184 = vxpose.xlu0.b32.cont [4/16] 0.0, 128
        %1185 = vxpose.xlu0.b32.cont [5/16] 0.0, 128
        %1186 = vxpose.xlu0.b32.cont [6/16] 0.0, 128
        %1187 = vxpose.xlu0.b32.cont [7/16] 0.0, 128
        %1188 = vxpose.xlu0.b32.cont [8/16] 0.0, 128
        %1189 = vxpose.xlu0.b32.cont [9/16] 0.0, 128
        %1190 = vxpose.xlu0.b32.cont [10/16] 0.0, 128
        %1191 = vxpose.xlu0.b32.cont [11/16] 0.0, 128
        %1192 = vxpose.xlu0.b32.cont [12/16] 0.0, 128
        %1193 = vxpose.xlu0.b32.cont [13/16] 0.0, 128
        %1194 = vxpose.xlu0.b32.cont [14/16] 0.0, 128
        %1195 = vxpose.xlu0.b32.cont [15/16] 0.0, 128
        %1196 = vxpose.xlu0.b32.end [16/16] 0.0, 128
        %v1197 = vpop.trf.xlu0
        %v1198 = vpop.trf.xlu0
        %v1199 = vpop.trf.xlu0
        %v1200 = vpop.trf.xlu0
        %v1201 = vpop.trf.xlu0
        %v1202 = vpop.trf.xlu0
        %v1203 = vpop.trf.xlu0
        %v1204 = vpop.trf.xlu0
        %v1205 = vpop.trf.xlu0
        %v1206 = vpop.trf.xlu0
        %v1207 = vpop.trf.xlu0
        %v1208 = vpop.trf.xlu0
        %v1209 = vpop.trf.xlu0
        %v1210 = vpop.trf.xlu0
        %v1211 = vpop.trf.xlu0
        %v1212 = vpop.trf.xlu0
        %vm1213 = vcmask 64512
        %1214 = vst.msk [vmem:[%s407] sm:$0xff] %vm1213, %v1197
        %1215 = vst.msk [vmem:[%s407 + $0x8] sm:$0xff] %vm1213, %v1198
        %1216 = vst.msk [vmem:[%s407 + $0x10] sm:$0xff] %vm1213, %v1199
        %1217 = vst.msk [vmem:[%s407 + $0x18] sm:$0xff] %vm1213, %v1200
        %1218 = vst.msk [vmem:[%s407 + $0x20] sm:$0xff] %vm1213, %v1201
        %1219 = vst.msk [vmem:[%s407 + $0x28] sm:$0xff] %vm1213, %v1202
        %1220 = vst.msk [vmem:[%s407 + $0x30] sm:$0xff] %vm1213, %v1203
        %1221 = vst.msk [vmem:[%s407 + $0x38] sm:$0xff] %vm1213, %v1204
        %1222 = vst.msk [vmem:[%s407 + $0x40] sm:$0xff] %vm1213, %v1205
        %1223 = vst.msk [vmem:[%s407 + $0x48] sm:$0xff] %vm1213, %v1206
        %1224 = vst.msk [vmem:[%s407 + $0x50] sm:$0xff] %vm1213, %v1207
        %1225 = vst.msk [vmem:[%s407 + $0x58] sm:$0xff] %vm1213, %v1208
        %1226 = vst.msk [vmem:[%s407 + $0x60] sm:$0xff] %vm1213, %v1209
        %1227 = vst.msk [vmem:[%s407 + $0x68] sm:$0xff] %vm1213, %v1210
        %1228 = vst.msk [vmem:[%s407 + $0x70] sm:$0xff] %vm1213, %v1211
        %1229 = vst.msk [vmem:[%s407 + $0x78] sm:$0xff] %vm1213, %v1212
        %p1230 = scmp.lt.s32.totalorder %s29, 1
        %s1231 = scalar_select %p1230, %s29, 1
        %p1232 = scmp.lt.s32.totalorder %s30, 0
        %s1233 = scalar_select %p1232, %s30, 0
        %s1234 = smul.addr %s1231, 16
        %s1235 = sadd.s32 %s1233, %s1234
        %s1236 = smul.addr %s1235, 8
        %s1237 = scalar_lea.vmem %s7, %s1236
        // Predicated region
        $region69: #{tpu_custom_call.1} parent=47 // pred_check
          %p1238 = pneg %p220
        $region70: #{tpu_custom_call.1} parent=47 // pred_check_branch
          %1240 = sbr.rel (%p1238) target = $region72
        $region71: #{tpu_custom_call.1} parent=47 // pred_region
          _
        $region72: #{tpu_custom_call.1} parent=47 // pred_fallthru
          _
      $region48: #{tpu_custom_call.1} parent=5 // pred_fallthru
        _
      %p1241 = scmp.le.s32.totalorder 2, %s20
      // Predicated region
      $region73: #{tpu_custom_call.1} parent=5 // pred_check
        %p1242 = pneg %p1241
      $region74: #{tpu_custom_call.1} parent=5 // pred_check_branch
        %1244 = sbr.rel (%p1242) target = $region76
      $region75: #{tpu_custom_call.1} parent=5 // pred_region
        %s1245 = ssub.s32 %s20, 2
        // Predicated region
        $region77: #{tpu_custom_call.1} parent=75 // pred_check
          %p1246 = pneg %p226
        $region78: #{tpu_custom_call.1} parent=75 // pred_check_branch
          %1248 = sbr.rel (%p1246) target = $region80
        $region79: #{tpu_custom_call.1} parent=75 // pred_region
          %p1249 = scmp.lt.s32.totalorder %s31, 1
          %s1250 = scalar_select %p1249, %s31, 1
          %p1251 = scmp.lt.s32.totalorder %s32, 0
          %s1252 = scalar_select %p1251, %s32, 0
          %s1253 = smul.addr %s1250, 16
          %s1254 = sadd.s32 %s1252, %s1253
          %s1255 = smul.addr %s1254, 8
          %s1256 = scalar_lea.vmem %s7, %s1255
        $region80: #{tpu_custom_call.1} parent=75 // pred_fallthru
          _
      $region76: #{tpu_custom_call.1} parent=5 // pred_fallthru
        _
    $region6: #{tpu_custom_call.1} parent=1 // loop_footer
      %s24 = sadd.s32 1, %s20
    $region7: #{tpu_custom_call.1} parent=1 // loop_footer_branch
      %19 = sbr.rel target = $region3
    $region8: #{tpu_custom_call.1} parent=1 // loop_exit
      _
    %1257 = vsyncpa [#allocation3], 1
    %s1258 = scalar_lea.sflag [#allocation3], 1
    %1259 = vsyncpa %s1258, 1
    %1260 = vsyncpa [#allocation5], 1
    %s1261 = scalar_lea.sflag [#allocation5], 1
    %1262 = vsyncpa %s1261, 1
    %1263 = vsyncpa [#allocation8], 1

</llo_original>
